<compile_context>
chip_gen: v7x
topology: tpu7x:2x2x1
jax: 0.10.0
libtpu: 0.0.40
codegen_flags: <defaults>
</compile_context>

<pallas_src>
import jax
import jax.numpy as jnp
from jax import lax
from jax.experimental import pallas as pl
from jax.experimental.pallas import tpu as pltpu

_HIGHEST = lax.Precision.HIGHEST


def attention_kernel(q_ref, k_ref, v_ref, w_ref, o_ref):
    B, S, D = k_ref.shape

    q = q_ref[...].astype(jnp.float32)   # (B, D)
    k = k_ref[...]                       # (B, S, D)
    v = v_ref[...]                       # (B, S, D)
    w = w_ref[...]                       # (D, D)

    # ---- first matmul: single M = B*S MXU dot, S-reduction afterwards ------
    # (better MXU row fill than M=B, and no cross-sublane reduce feeding the MXU)
    kf = k.reshape(B * S, D)                                        # trivial reshape
    kproj = jnp.einsum("mj,ij->mi", kf, w,
                       precision=_HIGHEST,
                       preferred_element_type=jnp.float32)          # (B*S, D)
    t = jnp.sum(kproj.reshape(B, S, D), axis=1)                     # (B, D)

    # Rank-1 outer product on the VPU: s[b, i, j] = t[b, i] * q[b, j]
    s = t[:, :, None] * q[:, None, :]                               # (B, D, D) f32

    # ---- softmax across axis 0 (the BATCH axis) -----------------------------
    # PyTorch's legacy implicit-dim rule picks dim=0 for a 3-D input; this
    # couples batch elements, so this kernel must never be tiled over B.
    m = jnp.max(s, axis=0, keepdims=True)
    e = jnp.exp(s - m)
    denom = jnp.sum(e, axis=0, keepdims=True)
    attn = e / denom   # exact division: no VLIW slot is near saturation here,
                       # and it keeps tight parity with the f32 reference.

    # TODO(synk): nn.Dropout(0.1) is stochastic in train mode; eval-mode identity here.

    # ---- out[b] = v[b] @ attn[b]: one batched dot + one full-slab store -----
    out = jnp.einsum("bsd,bde->bse", v, attn.astype(v.dtype),
                     precision=_HIGHEST,
                     preferred_element_type=jnp.float32)             # (B, S, D)
    o_ref[...] = out.astype(o_ref.dtype)
    # Note: output last dim is 32 (<128) so stores are masked; repacking the
    # 2 KiB result into a (B*S*D//128, 128) lane-dense slab would need a
    # lane-crossing relayout for negligible gain, so it is intentionally skipped.


def attention_pallas(q, k, v, w):
    """q:(B,D), k:(B,S,D), v:(B,S,D), w:(D,D) -> (B,S,D)."""
    B, S, D = k.shape

    # Advisory cost estimate so XLA can overlap this tiny, overhead-bound call.
    flops = (2 * B * S * D * D      # k @ W^T
             + 2 * B * D * D        # rank-1 outer product
             + 5 * B * D * D        # softmax elementwise work
             + 2 * B * S * D * D)   # v @ attn
    bytes_accessed = 4 * (B * D + 2 * B * S * D + D * D + B * S * D)

    # k/v are deliberately NOT concatenated in the wrapper: an XLA concat would
    # add a separate kernel plus an HBM round-trip of the same ~8 KiB it saves
    # in DMA-descriptor setup (net zero or worse at this size).
    #
    # Single grid point, everything resident in VMEM: the batch-axis softmax
    # couples all batches and total traffic is ~10 KiB, so the kernel is pure
    # fixed overhead.  If S/D ever scale, tile S (never B) with a "parallel"
    # grid axis for v7x's two TensorCores and budget tiles against v7x's
    # 64 MiB VMEM (32 MiB default scoped), not v5e/v6e's 128 MiB.
    return pl.pallas_call(
        attention_kernel,
        out_shape=jax.ShapeDtypeStruct((B, S, D), k.dtype),
        in_specs=[pl.BlockSpec(memory_space=pltpu.MemorySpace.VMEM)] * 4,
        out_specs=pl.BlockSpec(memory_space=pltpu.MemorySpace.VMEM),
        cost_estimate=pl.CostEstimate(
            flops=flops,
            transcendentals=B * D * D,
            bytes_accessed=bytes_accessed,
        ),
    )(q, k, v, w)


def attention_ref(q, k, v, w):
    """Pure-JAX reference mirroring the PyTorch forward exactly (no rewrite)."""
    B, S, D = k.shape
    q_exp = jnp.broadcast_to(q[:, None, :], (B, S, D))
    step1 = jnp.einsum("ij,bsj->bis", w, k, precision=_HIGHEST)
    s = jnp.einsum("bis,bsj->bij", step1, q_exp, precision=_HIGHEST)
    attn = jax.nn.softmax(s, axis=0)   # PyTorch implicit dim=0 for 3-D input
    return jnp.einsum("bsd,bde->bse", v, attn, precision=_HIGHEST)


if __name__ == "__main__":
    B, S, D = 2, 8, 32  # batch, seq_len, d_model

    key = jax.random.PRNGKey(0)
    kq, kk, kv, kw = jax.random.split(key, 4)
    q = jax.random.normal(kq, (B, D), dtype=jnp.float32)
    k = jax.random.normal(kk, (B, S, D), dtype=jnp.float32)
    v = jax.random.normal(kv, (B, S, D), dtype=jnp.float32)

    # Deterministic stand-in for nn.Linear(d_model, d_model, bias=False).weight
    bound = 1.0 / (D ** 0.5)
    w = jax.random.uniform(kw, (D, D), dtype=jnp.float32,
                           minval=-bound, maxval=bound)

    out = jax.block_until_ready(attention_pallas(q, k, v, w))
    ref = attention_ref(q, k, v, w)

    assert out.shape == (B, S, D)
    # Both sides now run full-f32 contractions and an exact softmax divide, so
    # differences are pure summation-order noise (~1e-6); 2e-3 leaves headroom
    # for MXU pass-ordering while still catching any O(1) algorithmic error.
    assert jnp.allclose(out, ref, atol=2e-3, rtol=2e-3), "Pallas result mismatch"

    print("KERNEL_OK")
</pallas_src>

<mosaic_0001>
module attributes {stable_mosaic.version = 11 : i64} {
  func.func @attention_kernel(%arg0: memref<2x32xf32, #tpu.memory_space<vmem>>, %arg1: memref<2x8x32xf32, #tpu.memory_space<vmem>>, %arg2: memref<2x8x32xf32, #tpu.memory_space<vmem>>, %arg3: memref<32x32xf32, #tpu.memory_space<vmem>>, %arg4: memref<2x8x32xf32, #tpu.memory_space<vmem>>) attributes {dimension_semantics = [], scalar_prefetch = 0 : i64, scratch_operands = 0 : i64, tpu.core_type = #tpu.core_type<tc>} {
    %c0 = arith.constant 0 : index
    %c0_0 = arith.constant 0 : index
    %0 = vector.load %arg0[%c0, %c0_0] : memref<2x32xf32, #tpu.memory_space<vmem>>, vector<2x32xf32>
    %c0_1 = arith.constant 0 : index
    %c0_2 = arith.constant 0 : index
    %c0_3 = arith.constant 0 : index
    %1 = vector.load %arg1[%c0_1, %c0_2, %c0_3] : memref<2x8x32xf32, #tpu.memory_space<vmem>>, vector<2x8x32xf32>
    %c0_4 = arith.constant 0 : index
    %c0_5 = arith.constant 0 : index
    %c0_6 = arith.constant 0 : index
    %2 = vector.load %arg2[%c0_4, %c0_5, %c0_6] : memref<2x8x32xf32, #tpu.memory_space<vmem>>, vector<2x8x32xf32>
    %c0_7 = arith.constant 0 : index
    %c0_8 = arith.constant 0 : index
    %3 = vector.load %arg3[%c0_7, %c0_8] : memref<32x32xf32, #tpu.memory_space<vmem>>, vector<32x32xf32>
    %4 = vector.shape_cast %1 : vector<2x8x32xf32> to vector<16x32xf32>
    "tpu.trace_start"() <{level = 10 : i32, message = "mj,ij->mi"}> : () -> ()
    %cst = arith.constant dense<0.000000e+00> : vector<16x32xf32>
    %5 = tpu.matmul %4, %3, %cst {dimension_numbers = #tpu.dot_dimension_numbers<[1], [1], [0], [0], [0, 0, 1, 0], [], []>, precision = #tpu.contract_precision<fp32>} : vector<16x32xf32>, vector<32x32xf32>, vector<16x32xf32> -> vector<16x32xf32>
    "tpu.trace_stop"() : () -> ()
    %6 = vector.shape_cast %5 : vector<16x32xf32> to vector<2x8x32xf32>
    %cst_9 = arith.constant dense<0.000000e+00> : vector<2x32xf32>
    %7 = vector.multi_reduction <add>, %6, %cst_9 [1] : vector<2x8x32xf32> to vector<2x32xf32>
    %8 = vector.shape_cast %7 : vector<2x32xf32> to vector<2x32x1xf32>
    %9 = vector.shape_cast %0 : vector<2x32xf32> to vector<2x1x32xf32>
    %10 = vector.broadcast %8 : vector<2x32x1xf32> to vector<2x32x32xf32>
    %11 = vector.broadcast %9 : vector<2x1x32xf32> to vector<2x32x32xf32>
    %12 = arith.mulf %10, %11 : vector<2x32x32xf32>
    %cst_10 = arith.constant dense<0xFF800000> : vector<32x32xf32>
    %13 = vector.multi_reduction <maximumf>, %12, %cst_10 [0] : vector<2x32x32xf32> to vector<32x32xf32>
    %14 = vector.shape_cast %13 : vector<32x32xf32> to vector<1x32x32xf32>
    %15 = vector.broadcast %14 : vector<1x32x32xf32> to vector<2x32x32xf32>
    %16 = arith.subf %12, %15 : vector<2x32x32xf32>
    %17 = math.exp %16 : vector<2x32x32xf32>
    %cst_11 = arith.constant dense<0.000000e+00> : vector<32x32xf32>
    %18 = vector.multi_reduction <add>, %17, %cst_11 [0] : vector<2x32x32xf32> to vector<32x32xf32>
    %19 = vector.shape_cast %18 : vector<32x32xf32> to vector<1x32x32xf32>
    %20 = vector.broadcast %19 : vector<1x32x32xf32> to vector<2x32x32xf32>
    %21 = arith.divf %17, %20 : vector<2x32x32xf32>
    "tpu.trace_start"() <{level = 10 : i32, message = "bsd,bde->bse"}> : () -> ()
    %cst_12 = arith.constant dense<0.000000e+00> : vector<2x8x32xf32>
    %22 = tpu.matmul %2, %21, %cst_12 {dimension_numbers = #tpu.dot_dimension_numbers<[2], [1], [1], [2], [0, 0, 0, 1, 1, 2], [0], [0]>, precision = #tpu.contract_precision<fp32>} : vector<2x8x32xf32>, vector<2x32x32xf32>, vector<2x8x32xf32> -> vector<2x8x32xf32>
    "tpu.trace_stop"() : () -> ()
    %c0_13 = arith.constant 0 : index
    %c0_14 = arith.constant 0 : index
    %c0_15 = arith.constant 0 : index
    %23 = vector.load %arg4[%c0_13, %c0_14, %c0_15] : memref<2x8x32xf32, #tpu.memory_space<vmem>>, vector<2x8x32xf32>
    tpu.vector_store %arg4[%c0_13, %c0_14, %c0_15], %22 {strides = array<i32>} : memref<2x8x32xf32, #tpu.memory_space<vmem>>, vector<2x8x32xf32>,
    return
  }
}

</mosaic_0001>

<llo_original>
// kernel: tpu_custom_call.1
$region0: #{tpu_custom_call.1}
  #allocation0 [shape = 'u32[]', space=smem, size = 0x4, offset = 0x4, fixed_abs, tag = 'smem constant byte address 0x4 - core index']
  #allocation1 [shape = 'u32[144,128]{1,0:T(1,128)}', space=vmem, size = 0x12000, scoped, tag = 'internal scratch']
  %s0 = inlined_call_operand.hbm [shape: f32[2,32], index: 0, kind: input, shape index: {}]
  %s1 = inlined_call_operand.hbm [shape: f32[2,8,32], index: 1, kind: input, shape index: {}]
  %s2 = inlined_call_operand.hbm [shape: f32[2,8,32], index: 2, kind: input, shape index: {}]
  %s3 = inlined_call_operand.hbm [shape: f32[32,32], index: 3, kind: input, shape index: {}]
  %s4 = inlined_call_operand.hbm [shape: f32[2,8,32], index: 4, kind: output, shape index: {}]
  %s5 = sld [smem:[#allocation0]]
  $region42: #{tpu_custom_call.1} parent=0
    _
  %s7 = ssub.s32 1, %s5
  %s8 = scalar_select 0, %s7, %s5
  $region1: #{tpu_custom_call.1} parent=0
    #allocation2 [shape = 'u8[1024]{0}', space=vmem, size = 0x400, scoped, tag = 'input window, operand 0, single buffered']
    #allocation3 [shape = 's32[1]{0}', space=sflag, size = 0x4, scoped, tag = 'scoped memory for tpu_custom_call.1']
    #allocation4 [shape = 's32[1]{0}', space=sflag, size = 0x4, scoped, tag = 'scoped memory for tpu_custom_call.1']
    #allocation5 [shape = 'u8[8192]{0}', space=vmem, size = 0x2000, scoped, tag = 'input window, operand 1, single buffered']
    #allocation6 [shape = 's32[1]{0}', space=sflag, size = 0x4, scoped, tag = 'scoped memory for tpu_custom_call.1']
    #allocation7 [shape = 'u8[8192]{0}', space=vmem, size = 0x2000, scoped, tag = 'input window, operand 2, single buffered']
    #allocation8 [shape = 'u8[16384]{0}', space=vmem, size = 0x4000, scoped, tag = 'input window, operand 3, single buffered']
    #allocation9 [shape = 's32[1]{0}', space=sflag, size = 0x4, scoped, tag = 'scoped memory for tpu_custom_call.1']
    #allocation10 [shape = 'u8[8192]{0}', space=vmem, size = 0x2000, scoped, tag = 'output window, operand 0, single buffered']
    %9 = vsyncpa [#allocation3], 0
    %10 = vsyncpa [#allocation6], 0
    %11 = vsyncpa [#allocation9], 0
    %12 = vsyncpa [#allocation4], 0
    // Predicated region
    $region2: #{tpu_custom_call.1} parent=1 // pred_check
      _
    $region3: #{tpu_custom_call.1} parent=1 // pred_check_branch
      %14 = sbr.rel (0) target = $region5
    $region4: #{tpu_custom_call.1} parent=1 // pred_region
      %s16 = ssub.s32 32, 32
      %17 = vsyncadd [#allocation3], %s16
      %s19 = sshll.u32 [#allocation2], 4
      %s20 = int_to_ptr.vmem [resolvable:$true] %s19
      %22 = dma.hbm_to_vmem [thread:$0]  %s0, 32, %s20, [#allocation3]
    $region5: #{tpu_custom_call.1} parent=1 // pred_fallthru
      _
    // Predicated region
    $region6: #{tpu_custom_call.1} parent=1 // pred_check
      _
    $region7: #{tpu_custom_call.1} parent=1 // pred_check_branch
      %24 = sbr.rel (0) target = $region9
    $region8: #{tpu_custom_call.1} parent=1 // pred_region
      %s26 = ssub.s32 256, 256
      %27 = vsyncadd [#allocation6], %s26
      %s28 = sshll.u32 [#allocation5], 4
      %s29 = int_to_ptr.vmem [resolvable:$true] %s28
      %34 = dma.hbm_to_vmem [thread:$0]  %s1, 256, %s29, [#allocation6], 128, 128, 8
    $region9: #{tpu_custom_call.1} parent=1 // pred_fallthru
      _
    // Predicated region
    $region10: #{tpu_custom_call.1} parent=1 // pred_check
      _
    $region11: #{tpu_custom_call.1} parent=1 // pred_check_branch
      %36 = sbr.rel (0) target = $region13
    $region12: #{tpu_custom_call.1} parent=1 // pred_region
      %s38 = ssub.s32 256, 256
      %39 = vsyncadd [#allocation6], %s38
      %s40 = sshll.u32 [#allocation7], 4
      %s41 = int_to_ptr.vmem [resolvable:$true] %s40
      %46 = dma.hbm_to_vmem [thread:$0]  %s2, 256, %s41, [#allocation6], 128, 128, 8
    $region13: #{tpu_custom_call.1} parent=1 // pred_fallthru
      _
    // Predicated region
    $region14: #{tpu_custom_call.1} parent=1 // pred_check
      _
    $region15: #{tpu_custom_call.1} parent=1 // pred_check_branch
      %48 = sbr.rel (0) target = $region17
    $region16: #{tpu_custom_call.1} parent=1 // pred_region
      %s50 = ssub.s32 512, 512
      %51 = vsyncadd [#allocation9], %s50
      %s52 = sshll.u32 [#allocation8], 4
      %s53 = int_to_ptr.vmem [resolvable:$true] %s52
      %58 = dma.hbm_to_vmem [thread:$0]  %s3, 512, %s53, [#allocation9], 128, 128, 8
    $region17: #{tpu_custom_call.1} parent=1 // pred_fallthru
      _
    // Predicated region
    $region18: #{tpu_custom_call.1} parent=1 // pred_check
      _
    $region19: #{tpu_custom_call.1} parent=1 // pred_check_branch
      %60 = sbr.rel (0) target = $region21
    $region20: #{tpu_custom_call.1} parent=1 // pred_region
      %61 = dma.done [#allocation3], 32
    $region21: #{tpu_custom_call.1} parent=1 // pred_fallthru
      _
    // Predicated region
    $region22: #{tpu_custom_call.1} parent=1 // pred_check
      _
    $region23: #{tpu_custom_call.1} parent=1 // pred_check_branch
      %63 = sbr.rel (0) target = $region25
    $region24: #{tpu_custom_call.1} parent=1 // pred_region
      %64 = dma.done [#allocation6], 256
    $region25: #{tpu_custom_call.1} parent=1 // pred_fallthru
      _
    // Predicated region
    $region26: #{tpu_custom_call.1} parent=1 // pred_check
      _
    $region27: #{tpu_custom_call.1} parent=1 // pred_check_branch
      %66 = sbr.rel (0) target = $region29
    $region28: #{tpu_custom_call.1} parent=1 // pred_region
      %67 = dma.done [#allocation6], 256
    $region29: #{tpu_custom_call.1} parent=1 // pred_fallthru
      _
    // Predicated region
    $region30: #{tpu_custom_call.1} parent=1 // pred_check
      _
    $region31: #{tpu_custom_call.1} parent=1 // pred_check_branch
      %69 = sbr.rel (0) target = $region33
    $region32: #{tpu_custom_call.1} parent=1 // pred_region
      %70 = dma.done [#allocation9], 512
    $region33: #{tpu_custom_call.1} parent=1 // pred_fallthru
      _
    %v71 = vld [vmem:[#allocation2] sm:$0x3]
    %v72 = vld [vmem:[#allocation5] sm:$0xff]
    %v73 = vld [vmem:[#allocation5 + $0x8] sm:$0xff]
    %v74 = vld [vmem:[#allocation7] sm:$0xff]
    %v75 = vld [vmem:[#allocation7 + $0x8] sm:$0xff]
    %v76 = vld [vmem:[#allocation8] sm:$0xff]
    %v77 = vld [vmem:[#allocation8 + $0x8] sm:$0xff]
    %v78 = vld [vmem:[#allocation8 + $0x10] sm:$0xff]
    %v79 = vld [vmem:[#allocation8 + $0x18] sm:$0xff]
    %vm80 = vcmask 261120
    %v82 = vsel %vm80, %v72, 0
    %v85 = vsel %vm80, %v73, 0
    %v88 = vsel %vm80, %v76, 0
    %v91 = vsel %vm80, %v77, 0
    %v94 = vsel %vm80, %v78, 0
    %v97 = vsel %vm80, %v79, 0
    %99 = vmatprep.subr.mxu0 0.0
    %v100 = vand.u32 %v88, 4294901760
    %101 = vmatpush1.xpose.msra.mxu0 %v100
    %102 = vmatprep.subr.mxu0 0.0
    %v103 = vand.u32 %v91, 4294901760
    %104 = vmatpush1.xpose.msra.mxu0 %v103
    %105 = vmatprep.subr.mxu0 0.0
    %v106 = vand.u32 %v94, 4294901760
    %107 = vmatpush1.xpose.msra.mxu0 %v106
    %108 = vmatprep.subr.mxu0 0.0
    %v109 = vand.u32 %v97, 4294901760
    %110 = vmatpush1.xpose.msra.mxu0 %v109
    %111 = vmatprep.subr.mxu0 0.0
    %112 = vmatpush1.xpose.msra.mxu0 0.0
    %113 = vmatprep.subr.mxu0 0.0
    %114 = vmatpush1.xpose.msra.mxu0 0.0
    %115 = vmatprep.subr.mxu0 0.0
    %116 = vmatpush1.xpose.msra.mxu0 0.0
    %117 = vmatprep.subr.mxu0 0.0
    %118 = vmatpush1.xpose.msra.mxu0 0.0
    %119 = vmatprep.subr.mxu0 0.0
    %120 = vmatpush1.xpose.msra.mxu0 0.0
    %121 = vmatprep.subr.mxu0 0.0
    %122 = vmatpush1.xpose.msra.mxu0 0.0
    %123 = vmatprep.subr.mxu0 0.0
    %124 = vmatpush1.xpose.msra.mxu0 0.0
    %125 = vmatprep.subr.mxu0 0.0
    %126 = vmatpush1.xpose.msra.mxu0 0.0
    %127 = vmatprep.subr.mxu0 0.0
    %128 = vmatpush1.xpose.msra.mxu0 0.0
    %129 = vmatprep.subr.mxu0 0.0
    %130 = vmatpush1.xpose.msra.mxu0 0.0
    %131 = vmatprep.subr.mxu0 0.0
    %132 = vmatpush1.xpose.msra.mxu0 0.0
    %133 = vmatprep.subr.mxu0 0.0
    %134 = vmatpush1.xpose.msra.mxu0 0.0
    %135 = vmatprep.subr.mxu0 0.0
    %136 = vmatpush1.xpose.msra.mxu0 0.0
    %137 = vmatprep.subr.mxu0 0.0
    %138 = vmatpush1.xpose.msra.mxu0 0.0
    %139 = vmatprep.subr.mxu0 0.0
    %140 = vmatpush1.xpose.msra.mxu0 0.0
    %141 = vmatprep.subr.mxu0 0.0
    %142 = vmatpush1.xpose.msra.mxu0 0.0
    %143 = vmatprep.subr.mxu0 0.0
    %144 = vmatpush1.xpose.msra.mxu0 0.0
    %145 = vmatprep.subr.mxu0 0.0
    %146 = vmatpush1.xpose.msra.mxu0 0.0
    %147 = vmatprep.subr.mxu0 0.0
    %148 = vmatpush1.xpose.msra.mxu0 0.0
    %149 = vmatprep.subr.mxu0 0.0
    %150 = vmatpush1.xpose.msra.mxu0 0.0
    %151 = vmatprep.subr.mxu0 0.0
    %152 = vmatpush1.xpose.msra.mxu0 0.0
    %153 = vmatprep.subr.mxu0 0.0
    %154 = vmatpush1.xpose.msra.mxu0 0.0
    %155 = vmatprep.subr.mxu0 0.0
    %156 = vmatpush1.xpose.msra.mxu0 0.0
    %157 = vmatprep.subr.mxu0 0.0
    %158 = vmatpush1.xpose.msra.mxu0 0.0
    %159 = vmatprep.subr.mxu0 0.0
    %160 = vmatpush1.xpose.msra.mxu0 0.0
    %161 = vmatprep.subr.mxu0 0.0
    %162 = vmatpush1.xpose.msra.mxu0 0.0
    %163 = vmatprep.subr.mxu0 0.0
    %164 = vmatpush1.xpose.msra.mxu0 0.0
    %165 = vmatprep.subr.mxu0 0.0
    %166 = vmatpush1.xpose.msra.mxu0 0.0
    %167 = vmatprep.mubr.f32.mxu0 0.0
    %v168 = vand.u32 %v82, 4294901760
    %v169 = vsub.f32 %v82, %v168
    %v170 = vand.u32 %v169, 4294901760
    %v171 = vsub.f32 %v169, %v170
    %v172 = vand.u32 %v171, 4294901760
    %173 = vmatmul.mubr.f32.gmra.mrb[0].mxu0 %v172
    %v174 = vpop.f32.mrb[0].mxu0
    %v175 = vadd.f32 0.0, %v174
    %v176 = vpop.f32.mrb[0].mxu0
    %177 = vmatprep.mubr.f32.mxu0 0.0
    %v178 = vand.u32 %v85, 4294901760
    %v179 = vsub.f32 %v85, %v178
    %v180 = vand.u32 %v179, 4294901760
    %v181 = vsub.f32 %v179, %v180
    %v182 = vand.u32 %v181, 4294901760
    %183 = vmatmul.mubr.f32.gmra.mrb[0].mxu0 %v182
    %v184 = vpop.f32.mrb[0].mxu0
    %v185 = vadd.f32 0.0, %v184
    %v186 = vpop.f32.mrb[0].mxu0
    %187 = vdwg.mxu0
    %188 = vmatprep.subr.mxu0 0.0
    %v189 = vand.u32 %v88, 4294901760
    %v190 = vsub.f32 %v88, %v189
    %v191 = vand.u32 %v190, 4294901760
    %v192 = vsub.f32 %v190, %v191
    %v193 = vand.u32 %v192, 4294901760
    %194 = vmatpush1.xpose.msra.mxu0 %v193
    %195 = vmatprep.subr.mxu0 0.0
    %v196 = vand.u32 %v91, 4294901760
    %v197 = vsub.f32 %v91, %v196
    %v198 = vand.u32 %v197, 4294901760
    %v199 = vsub.f32 %v197, %v198
    %v200 = vand.u32 %v199, 4294901760
    %201 = vmatpush1.xpose.msra.mxu0 %v200
    %202 = vmatprep.subr.mxu0 0.0
    %v203 = vand.u32 %v94, 4294901760
    %v204 = vsub.f32 %v94, %v203
    %v205 = vand.u32 %v204, 4294901760
    %v206 = vsub.f32 %v204, %v205
    %v207 = vand.u32 %v206, 4294901760
    %208 = vmatpush1.xpose.msra.mxu0 %v207
    %209 = vmatprep.subr.mxu0 0.0
    %v210 = vand.u32 %v97, 4294901760
    %v211 = vsub.f32 %v97, %v210
    %v212 = vand.u32 %v211, 4294901760
    %v213 = vsub.f32 %v211, %v212
    %v214 = vand.u32 %v213, 4294901760
    %215 = vmatpush1.xpose.msra.mxu0 %v214
    %216 = vmatprep.subr.mxu0 0.0
    %217 = vmatpush1.xpose.msra.mxu0 0.0
    %218 = vmatprep.subr.mxu0 0.0
    %219 = vmatpush1.xpose.msra.mxu0 0.0
    %220 = vmatprep.subr.mxu0 0.0
    %221 = vmatpush1.xpose.msra.mxu0 0.0
    %222 = vmatprep.subr.mxu0 0.0
    %223 = vmatpush1.xpose.msra.mxu0 0.0
    %224 = vmatprep.subr.mxu0 0.0
    %225 = vmatpush1.xpose.msra.mxu0 0.0
    %226 = vmatprep.subr.mxu0 0.0
    %227 = vmatpush1.xpose.msra.mxu0 0.0
    %228 = vmatprep.subr.mxu0 0.0
    %229 = vmatpush1.xpose.msra.mxu0 0.0
    %230 = vmatprep.subr.mxu0 0.0
    %231 = vmatpush1.xpose.msra.mxu0 0.0
    %232 = vmatprep.subr.mxu0 0.0
    %233 = vmatpush1.xpose.msra.mxu0 0.0
    %234 = vmatprep.subr.mxu0 0.0
    %235 = vmatpush1.xpose.msra.mxu0 0.0
    %236 = vmatprep.subr.mxu0 0.0
    %237 = vmatpush1.xpose.msra.mxu0 0.0
    %238 = vmatprep.subr.mxu0 0.0
    %239 = vmatpush1.xpose.msra.mxu0 0.0
    %240 = vmatprep.subr.mxu0 0.0
    %241 = vmatpush1.xpose.msra.mxu0 0.0
    %242 = vmatprep.subr.mxu0 0.0
    %243 = vmatpush1.xpose.msra.mxu0 0.0
    %244 = vmatprep.subr.mxu0 0.0
    %245 = vmatpush1.xpose.msra.mxu0 0.0
    %246 = vmatprep.subr.mxu0 0.0
    %247 = vmatpush1.xpose.msra.mxu0 0.0
    %248 = vmatprep.subr.mxu0 0.0
    %249 = vmatpush1.xpose.msra.mxu0 0.0
    %250 = vmatprep.subr.mxu0 0.0
    %251 = vmatpush1.xpose.msra.mxu0 0.0
    %252 = vmatprep.subr.mxu0 0.0
    %253 = vmatpush1.xpose.msra.mxu0 0.0
    %254 = vmatprep.subr.mxu0 0.0
    %255 = vmatpush1.xpose.msra.mxu0 0.0
    %256 = vmatprep.subr.mxu0 0.0
    %257 = vmatpush1.xpose.msra.mxu0 0.0
    %258 = vmatprep.subr.mxu0 0.0
    %259 = vmatpush1.xpose.msra.mxu0 0.0
    %260 = vmatprep.subr.mxu0 0.0
    %261 = vmatpush1.xpose.msra.mxu0 0.0
    %262 = vmatprep.subr.mxu0 0.0
    %263 = vmatpush1.xpose.msra.mxu0 0.0
    %264 = vmatprep.subr.mxu0 0.0
    %265 = vmatpush1.xpose.msra.mxu0 0.0
    %266 = vmatprep.subr.mxu0 0.0
    %267 = vmatpush1.xpose.msra.mxu0 0.0
    %268 = vmatprep.subr.mxu0 0.0
    %269 = vmatpush1.xpose.msra.mxu0 0.0
    %270 = vmatprep.subr.mxu0 0.0
    %271 = vmatpush1.xpose.msra.mxu0 0.0
    %272 = vmatprep.mubr.f32.mxu0 0.0
    %v273 = vand.u32 %v82, 4294901760
    %274 = vmatmul.mubr.f32.gmra.mrb[0].mxu0 %v273
    %v275 = vpop.f32.mrb[0].mxu0
    %v276 = vadd.f32 %v175, %v275
    %v277 = vpop.f32.mrb[0].mxu0
    %278 = vmatprep.mubr.f32.mxu0 0.0
    %v279 = vand.u32 %v85, 4294901760
    %280 = vmatmul.mubr.f32.gmra.mrb[0].mxu0 %v279
    %v281 = vpop.f32.mrb[0].mxu0
    %v282 = vadd.f32 %v185, %v281
    %v283 = vpop.f32.mrb[0].mxu0
    %284 = vdwg.mxu0
    %285 = vmatprep.subr.mxu0 0.0
    %v286 = vand.u32 %v88, 4294901760
    %v287 = vsub.f32 %v88, %v286
    %288 = vmatpush1.xpose.msra.mxu0 %v287
    %289 = vmatprep.subr.mxu0 0.0
    %v290 = vand.u32 %v91, 4294901760
    %v291 = vsub.f32 %v91, %v290
    %292 = vmatpush1.xpose.msra.mxu0 %v291
    %293 = vmatprep.subr.mxu0 0.0
    %v294 = vand.u32 %v94, 4294901760
    %v295 = vsub.f32 %v94, %v294
    %296 = vmatpush1.xpose.msra.mxu0 %v295
    %297 = vmatprep.subr.mxu0 0.0
    %v298 = vand.u32 %v97, 4294901760
    %v299 = vsub.f32 %v97, %v298
    %300 = vmatpush1.xpose.msra.mxu0 %v299
    %301 = vmatprep.subr.mxu0 0.0
    %302 = vmatpush1.xpose.msra.mxu0 0.0
    %303 = vmatprep.subr.mxu0 0.0
    %304 = vmatpush1.xpose.msra.mxu0 0.0
    %305 = vmatprep.subr.mxu0 0.0
    %306 = vmatpush1.xpose.msra.mxu0 0.0
    %307 = vmatprep.subr.mxu0 0.0
    %308 = vmatpush1.xpose.msra.mxu0 0.0
    %309 = vmatprep.subr.mxu0 0.0
    %310 = vmatpush1.xpose.msra.mxu0 0.0
    %311 = vmatprep.subr.mxu0 0.0
    %312 = vmatpush1.xpose.msra.mxu0 0.0
    %313 = vmatprep.subr.mxu0 0.0
    %314 = vmatpush1.xpose.msra.mxu0 0.0
    %315 = vmatprep.subr.mxu0 0.0
    %316 = vmatpush1.xpose.msra.mxu0 0.0
    %317 = vmatprep.subr.mxu0 0.0
    %318 = vmatpush1.xpose.msra.mxu0 0.0
    %319 = vmatprep.subr.mxu0 0.0
    %320 = vmatpush1.xpose.msra.mxu0 0.0
    %321 = vmatprep.subr.mxu0 0.0
    %322 = vmatpush1.xpose.msra.mxu0 0.0
    %323 = vmatprep.subr.mxu0 0.0
    %324 = vmatpush1.xpose.msra.mxu0 0.0
    %325 = vmatprep.subr.mxu0 0.0
    %326 = vmatpush1.xpose.msra.mxu0 0.0
    %327 = vmatprep.subr.mxu0 0.0
    %328 = vmatpush1.xpose.msra.mxu0 0.0
    %329 = vmatprep.subr.mxu0 0.0
    %330 = vmatpush1.xpose.msra.mxu0 0.0
    %331 = vmatprep.subr.mxu0 0.0
    %332 = vmatpush1.xpose.msra.mxu0 0.0
    %333 = vmatprep.subr.mxu0 0.0
    %334 = vmatpush1.xpose.msra.mxu0 0.0
    %335 = vmatprep.subr.mxu0 0.0
    %336 = vmatpush1.xpose.msra.mxu0 0.0
    %337 = vmatprep.subr.mxu0 0.0
    %338 = vmatpush1.xpose.msra.mxu0 0.0
    %339 = vmatprep.subr.mxu0 0.0
    %340 = vmatpush1.xpose.msra.mxu0 0.0
    %341 = vmatprep.subr.mxu0 0.0
    %342 = vmatpush1.xpose.msra.mxu0 0.0
    %343 = vmatprep.subr.mxu0 0.0
    %344 = vmatpush1.xpose.msra.mxu0 0.0
    %345 = vmatprep.subr.mxu0 0.0
    %346 = vmatpush1.xpose.msra.mxu0 0.0
    %347 = vmatprep.subr.mxu0 0.0
    %348 = vmatpush1.xpose.msra.mxu0 0.0
    %349 = vmatprep.subr.mxu0 0.0
    %350 = vmatpush1.xpose.msra.mxu0 0.0
    %351 = vmatprep.subr.mxu0 0.0
    %352 = vmatpush1.xpose.msra.mxu0 0.0
    %353 = vmatprep.subr.mxu0 0.0
    %354 = vmatpush1.xpose.msra.mxu0 0.0
    %355 = vmatprep.subr.mxu0 0.0
    %356 = vmatpush1.xpose.msra.mxu0 0.0
    %357 = vmatprep.mubr.f32.mxu0 0.0
    %v358 = vand.u32 %v82, 4294901760
    %v359 = vsub.f32 %v82, %v358
    %360 = vmatmul.mubr.f32.gmra.mrb[0].mxu0 %v359
    %v361 = vpop.f32.mrb[0].mxu0
    %v362 = vadd.f32 %v276, %v361
    %v363 = vpop.f32.mrb[0].mxu0
    %364 = vmatprep.mubr.f32.mxu0 0.0
    %v365 = vand.u32 %v85, 4294901760
    %v366 = vsub.f32 %v85, %v365
    %367 = vmatmul.mubr.f32.gmra.mrb[0].mxu0 %v366
    %v368 = vpop.f32.mrb[0].mxu0
    %v369 = vadd.f32 %v282, %v368
    %v370 = vpop.f32.mrb[0].mxu0
    %371 = vdwg.mxu0
    %372 = vmatprep.subr.mxu0 0.0
    %v373 = vand.u32 %v88, 4294901760
    %374 = vmatpush1.xpose.msra.mxu0 %v373
    %375 = vmatprep.subr.mxu0 0.0
    %v376 = vand.u32 %v91, 4294901760
    %377 = vmatpush1.xpose.msra.mxu0 %v376
    %378 = vmatprep.subr.mxu0 0.0
    %v379 = vand.u32 %v94, 4294901760
    %380 = vmatpush1.xpose.msra.mxu0 %v379
    %381 = vmatprep.subr.mxu0 0.0
    %v382 = vand.u32 %v97, 4294901760
    %383 = vmatpush1.xpose.msra.mxu0 %v382
    %384 = vmatprep.subr.mxu0 0.0
    %385 = vmatpush1.xpose.msra.mxu0 0.0
    %386 = vmatprep.subr.mxu0 0.0
    %387 = vmatpush1.xpose.msra.mxu0 0.0
    %388 = vmatprep.subr.mxu0 0.0
    %389 = vmatpush1.xpose.msra.mxu0 0.0
    %390 = vmatprep.subr.mxu0 0.0
    %391 = vmatpush1.xpose.msra.mxu0 0.0
    %392 = vmatprep.subr.mxu0 0.0
    %393 = vmatpush1.xpose.msra.mxu0 0.0
    %394 = vmatprep.subr.mxu0 0.0
    %395 = vmatpush1.xpose.msra.mxu0 0.0
    %396 = vmatprep.subr.mxu0 0.0
    %397 = vmatpush1.xpose.msra.mxu0 0.0
    %398 = vmatprep.subr.mxu0 0.0
    %399 = vmatpush1.xpose.msra.mxu0 0.0
    %400 = vmatprep.subr.mxu0 0.0
    %401 = vmatpush1.xpose.msra.mxu0 0.0
    %402 = vmatprep.subr.mxu0 0.0
    %403 = vmatpush1.xpose.msra.mxu0 0.0
    %404 = vmatprep.subr.mxu0 0.0
    %405 = vmatpush1.xpose.msra.mxu0 0.0
    %406 = vmatprep.subr.mxu0 0.0
    %407 = vmatpush1.xpose.msra.mxu0 0.0
    %408 = vmatprep.subr.mxu0 0.0
    %409 = vmatpush1.xpose.msra.mxu0 0.0
    %410 = vmatprep.subr.mxu0 0.0
    %411 = vmatpush1.xpose.msra.mxu0 0.0
    %412 = vmatprep.subr.mxu0 0.0
    %413 = vmatpush1.xpose.msra.mxu0 0.0
    %414 = vmatprep.subr.mxu0 0.0
    %415 = vmatpush1.xpose.msra.mxu0 0.0
    %416 = vmatprep.subr.mxu0 0.0
    %417 = vmatpush1.xpose.msra.mxu0 0.0
    %418 = vmatprep.subr.mxu0 0.0
    %419 = vmatpush1.xpose.msra.mxu0 0.0
    %420 = vmatprep.subr.mxu0 0.0
    %421 = vmatpush1.xpose.msra.mxu0 0.0
    %422 = vmatprep.subr.mxu0 0.0
    %423 = vmatpush1.xpose.msra.mxu0 0.0
    %424 = vmatprep.subr.mxu0 0.0
    %425 = vmatpush1.xpose.msra.mxu0 0.0
    %426 = vmatprep.subr.mxu0 0.0
    %427 = vmatpush1.xpose.msra.mxu0 0.0
    %428 = vmatprep.subr.mxu0 0.0
    %429 = vmatpush1.xpose.msra.mxu0 0.0
    %430 = vmatprep.subr.mxu0 0.0
    %431 = vmatpush1.xpose.msra.mxu0 0.0
    %432 = vmatprep.subr.mxu0 0.0
    %433 = vmatpush1.xpose.msra.mxu0 0.0
    %434 = vmatprep.subr.mxu0 0.0
    %435 = vmatpush1.xpose.msra.mxu0 0.0
    %436 = vmatprep.subr.mxu0 0.0
    %437 = vmatpush1.xpose.msra.mxu0 0.0
    %438 = vmatprep.subr.mxu0 0.0
    %439 = vmatpush1.xpose.msra.mxu0 0.0
    %440 = vmatprep.mubr.f32.mxu0 0.0
    %v441 = vand.u32 %v82, 4294901760
    %v442 = vsub.f32 %v82, %v441
    %v443 = vand.u32 %v442, 4294901760
    %444 = vmatmul.mubr.f32.gmra.mrb[0].mxu0 %v443
    %v445 = vpop.f32.mrb[0].mxu0
    %v446 = vadd.f32 %v362, %v445
    %v447 = vpop.f32.mrb[0].mxu0
    %448 = vmatprep.mubr.f32.mxu0 0.0
    %v449 = vand.u32 %v85, 4294901760
    %v450 = vsub.f32 %v85, %v449
    %v451 = vand.u32 %v450, 4294901760
    %452 = vmatmul.mubr.f32.gmra.mrb[0].mxu0 %v451
    %v453 = vpop.f32.mrb[0].mxu0
    %v454 = vadd.f32 %v369, %v453
    %v455 = vpop.f32.mrb[0].mxu0
    %456 = vdwg.mxu0
    %457 = vmatprep.subr.mxu0 0.0
    %v458 = vand.u32 %v88, 4294901760
    %v459 = vsub.f32 %v88, %v458
    %v460 = vand.u32 %v459, 4294901760
    %461 = vmatpush1.xpose.msra.mxu0 %v460
    %462 = vmatprep.subr.mxu0 0.0
    %v463 = vand.u32 %v91, 4294901760
    %v464 = vsub.f32 %v91, %v463
    %v465 = vand.u32 %v464, 4294901760
    %466 = vmatpush1.xpose.msra.mxu0 %v465
    %467 = vmatprep.subr.mxu0 0.0
    %v468 = vand.u32 %v94, 4294901760
    %v469 = vsub.f32 %v94, %v468
    %v470 = vand.u32 %v469, 4294901760
    %471 = vmatpush1.xpose.msra.mxu0 %v470
    %472 = vmatprep.subr.mxu0 0.0
    %v473 = vand.u32 %v97, 4294901760
    %v474 = vsub.f32 %v97, %v473
    %v475 = vand.u32 %v474, 4294901760
    %476 = vmatpush1.xpose.msra.mxu0 %v475
    %477 = vmatprep.subr.mxu0 0.0
    %478 = vmatpush1.xpose.msra.mxu0 0.0
    %479 = vmatprep.subr.mxu0 0.0
    %480 = vmatpush1.xpose.msra.mxu0 0.0
    %481 = vmatprep.subr.mxu0 0.0
    %482 = vmatpush1.xpose.msra.mxu0 0.0
    %483 = vmatprep.subr.mxu0 0.0
    %484 = vmatpush1.xpose.msra.mxu0 0.0
    %485 = vmatprep.subr.mxu0 0.0
    %486 = vmatpush1.xpose.msra.mxu0 0.0
    %487 = vmatprep.subr.mxu0 0.0
    %488 = vmatpush1.xpose.msra.mxu0 0.0
    %489 = vmatprep.subr.mxu0 0.0
    %490 = vmatpush1.xpose.msra.mxu0 0.0
    %491 = vmatprep.subr.mxu0 0.0
    %492 = vmatpush1.xpose.msra.mxu0 0.0
    %493 = vmatprep.subr.mxu0 0.0
    %494 = vmatpush1.xpose.msra.mxu0 0.0
    %495 = vmatprep.subr.mxu0 0.0
    %496 = vmatpush1.xpose.msra.mxu0 0.0
    %497 = vmatprep.subr.mxu0 0.0
    %498 = vmatpush1.xpose.msra.mxu0 0.0
    %499 = vmatprep.subr.mxu0 0.0
    %500 = vmatpush1.xpose.msra.mxu0 0.0
    %501 = vmatprep.subr.mxu0 0.0
    %502 = vmatpush1.xpose.msra.mxu0 0.0
    %503 = vmatprep.subr.mxu0 0.0
    %504 = vmatpush1.xpose.msra.mxu0 0.0
    %505 = vmatprep.subr.mxu0 0.0
    %506 = vmatpush1.xpose.msra.mxu0 0.0
    %507 = vmatprep.subr.mxu0 0.0
    %508 = vmatpush1.xpose.msra.mxu0 0.0
    %509 = vmatprep.subr.mxu0 0.0
    %510 = vmatpush1.xpose.msra.mxu0 0.0
    %511 = vmatprep.subr.mxu0 0.0
    %512 = vmatpush1.xpose.msra.mxu0 0.0
    %513 = vmatprep.subr.mxu0 0.0
    %514 = vmatpush1.xpose.msra.mxu0 0.0
    %515 = vmatprep.subr.mxu0 0.0
    %516 = vmatpush1.xpose.msra.mxu0 0.0
    %517 = vmatprep.subr.mxu0 0.0
    %518 = vmatpush1.xpose.msra.mxu0 0.0
    %519 = vmatprep.subr.mxu0 0.0
    %520 = vmatpush1.xpose.msra.mxu0 0.0
    %521 = vmatprep.subr.mxu0 0.0
    %522 = vmatpush1.xpose.msra.mxu0 0.0
    %523 = vmatprep.subr.mxu0 0.0
    %524 = vmatpush1.xpose.msra.mxu0 0.0
    %525 = vmatprep.subr.mxu0 0.0
    %526 = vmatpush1.xpose.msra.mxu0 0.0
    %527 = vmatprep.subr.mxu0 0.0
    %528 = vmatpush1.xpose.msra.mxu0 0.0
    %529 = vmatprep.subr.mxu0 0.0
    %530 = vmatpush1.xpose.msra.mxu0 0.0
    %531 = vmatprep.subr.mxu0 0.0
    %532 = vmatpush1.xpose.msra.mxu0 0.0
    %533 = vmatprep.mubr.f32.mxu0 0.0
    %v534 = vand.u32 %v82, 4294901760
    %535 = vmatmul.mubr.f32.gmra.mrb[0].mxu0 %v534
    %v536 = vpop.f32.mrb[0].mxu0
    %v537 = vadd.f32 %v446, %v536
    %v538 = vpop.f32.mrb[0].mxu0
    %539 = vmatprep.mubr.f32.mxu0 0.0
    %v540 = vand.u32 %v85, 4294901760
    %541 = vmatmul.mubr.f32.gmra.mrb[0].mxu0 %v540
    %v542 = vpop.f32.mrb[0].mxu0
    %v543 = vadd.f32 %v454, %v542
    %v544 = vpop.f32.mrb[0].mxu0
    %545 = vdwg.mxu0
    %546 = vmatprep.subr.mxu0 0.0
    %v547 = vand.u32 %v88, 4294901760
    %548 = vmatpush1.xpose.msra.mxu0 %v547
    %549 = vmatprep.subr.mxu0 0.0
    %v550 = vand.u32 %v91, 4294901760
    %551 = vmatpush1.xpose.msra.mxu0 %v550
    %552 = vmatprep.subr.mxu0 0.0
    %v553 = vand.u32 %v94, 4294901760
    %554 = vmatpush1.xpose.msra.mxu0 %v553
    %555 = vmatprep.subr.mxu0 0.0
    %v556 = vand.u32 %v97, 4294901760
    %557 = vmatpush1.xpose.msra.mxu0 %v556
    %558 = vmatprep.subr.mxu0 0.0
    %559 = vmatpush1.xpose.msra.mxu0 0.0
    %560 = vmatprep.subr.mxu0 0.0
    %561 = vmatpush1.xpose.msra.mxu0 0.0
    %562 = vmatprep.subr.mxu0 0.0
    %563 = vmatpush1.xpose.msra.mxu0 0.0
    %564 = vmatprep.subr.mxu0 0.0
    %565 = vmatpush1.xpose.msra.mxu0 0.0
    %566 = vmatprep.subr.mxu0 0.0
    %567 = vmatpush1.xpose.msra.mxu0 0.0
    %568 = vmatprep.subr.mxu0 0.0
    %569 = vmatpush1.xpose.msra.mxu0 0.0
    %570 = vmatprep.subr.mxu0 0.0
    %571 = vmatpush1.xpose.msra.mxu0 0.0
    %572 = vmatprep.subr.mxu0 0.0
    %573 = vmatpush1.xpose.msra.mxu0 0.0
    %574 = vmatprep.subr.mxu0 0.0
    %575 = vmatpush1.xpose.msra.mxu0 0.0
    %576 = vmatprep.subr.mxu0 0.0
    %577 = vmatpush1.xpose.msra.mxu0 0.0
    %578 = vmatprep.subr.mxu0 0.0
    %579 = vmatpush1.xpose.msra.mxu0 0.0
    %580 = vmatprep.subr.mxu0 0.0
    %581 = vmatpush1.xpose.msra.mxu0 0.0
    %582 = vmatprep.subr.mxu0 0.0
    %583 = vmatpush1.xpose.msra.mxu0 0.0
    %584 = vmatprep.subr.mxu0 0.0
    %585 = vmatpush1.xpose.msra.mxu0 0.0
    %586 = vmatprep.subr.mxu0 0.0
    %587 = vmatpush1.xpose.msra.mxu0 0.0
    %588 = vmatprep.subr.mxu0 0.0
    %589 = vmatpush1.xpose.msra.mxu0 0.0
    %590 = vmatprep.subr.mxu0 0.0
    %591 = vmatpush1.xpose.msra.mxu0 0.0
    %592 = vmatprep.subr.mxu0 0.0
    %593 = vmatpush1.xpose.msra.mxu0 0.0
    %594 = vmatprep.subr.mxu0 0.0
    %595 = vmatpush1.xpose.msra.mxu0 0.0
    %596 = vmatprep.subr.mxu0 0.0
    %597 = vmatpush1.xpose.msra.mxu0 0.0
    %598 = vmatprep.subr.mxu0 0.0
    %599 = vmatpush1.xpose.msra.mxu0 0.0
    %600 = vmatprep.subr.mxu0 0.0
    %601 = vmatpush1.xpose.msra.mxu0 0.0
    %602 = vmatprep.subr.mxu0 0.0
    %603 = vmatpush1.xpose.msra.mxu0 0.0
    %604 = vmatprep.subr.mxu0 0.0
    %605 = vmatpush1.xpose.msra.mxu0 0.0
    %606 = vmatprep.subr.mxu0 0.0
    %607 = vmatpush1.xpose.msra.mxu0 0.0
    %608 = vmatprep.subr.mxu0 0.0
    %609 = vmatpush1.xpose.msra.mxu0 0.0
    %610 = vmatprep.subr.mxu0 0.0
    %611 = vmatpush1.xpose.msra.mxu0 0.0
    %612 = vmatprep.subr.mxu0 0.0
    %613 = vmatpush1.xpose.msra.mxu0 0.0
    %614 = vmatprep.mubr.f32.mxu0 0.0
    %v615 = vand.u32 %v82, 4294901760
    %616 = vmatmul.mubr.f32.gmra.mrb[0].mxu0 %v615
    %v617 = vpop.f32.mrb[0].mxu0
    %v618 = vadd.f32 %v537, %v617
    %v619 = vpop.f32.mrb[0].mxu0
    %620 = vmatprep.mubr.f32.mxu0 0.0
    %v621 = vand.u32 %v85, 4294901760
    %622 = vmatmul.mubr.f32.gmra.mrb[0].mxu0 %v621
    %v623 = vpop.f32.mrb[0].mxu0
    %v624 = vadd.f32 %v543, %v623
    %v625 = vpop.f32.mrb[0].mxu0
    %626 = vdwg.mxu0
    %v627 = vsel %vm80, %v618, 0.0
    %v628 = vrot.slane %v627, 4
    %v629 = vadd.f32 %v627, %v628
    %v630 = vrot.slane %v629, 2
    %v631 = vadd.f32 %v629, %v630
    %v632 = vrot.slane %v631, 1
    %v633 = vadd.f32 %v631, %v632
    %v634 = vsel %vm80, %v624, 0.0
    %v635 = vrot.slane %v634, 4
    %v636 = vadd.f32 %v634, %v635
    %v637 = vrot.slane %v636, 2
    %v638 = vadd.f32 %v636, %v637
    %v639 = vrot.slane %v638, 1
    %v640 = vadd.f32 %v638, %v639
    %642 = vbcast.lane.b32.xlu0 %v633, 256
    %v643 = vpop.permute.xlu0 %642
    %s645 = sor.u32 256, 8
    %646 = vbcast.lane.b32.xlu0 %v633, %s645
    %v647 = vpop.permute.xlu0 %646
    %s649 = sor.u32 256, 16
    %650 = vbcast.lane.b32.xlu0 %v633, %s649
    %v651 = vpop.permute.xlu0 %650
    %s653 = sor.u32 256, 24
    %654 = vbcast.lane.b32.xlu0 %v633, %s653
    %v655 = vpop.permute.xlu0 %654
    %657 = vbcast.lane.b32.xlu0 %v640, 256
    %v658 = vpop.permute.xlu0 %657
    %s660 = sor.u32 256, 8
    %661 = vbcast.lane.b32.xlu0 %v640, %s660
    %v662 = vpop.permute.xlu0 %661
    %s664 = sor.u32 256, 16
    %665 = vbcast.lane.b32.xlu0 %v640, %s664
    %v666 = vpop.permute.xlu0 %665
    %s668 = sor.u32 256, 24
    %669 = vbcast.lane.b32.xlu0 %v640, %s668
    %v670 = vpop.permute.xlu0 %669
    %v673 = vunpack.c.l.s4 1966171168
    %v674 = vunpack.c.0.s8 %v673
    %v675 = vlaneseq
    %v676 = vshrl.u32 %v675, 7
    %v677 = vsub.s32 %v674, %v676
    %v678 = vrot.slane %v71, %v677
    %v679 = vcombine.high %v678, %v678
    %v681 = vunpack.c.l.s4 1966171168
    %v682 = vunpack.c.0.s8 %v681
    %v683 = vlaneseq
    %v684 = vshrl.u32 %v683, 7
    %v685 = vsub.s32 %v682, %v684
    %v686 = vrot.slane %v678, %v685
    %v688 = vunpack.c.l.s4 1966171168
    %v689 = vunpack.c.0.s8 %v688
    %v690 = vlaneseq
    %v691 = vshrl.u32 %v690, 7
    %v692 = vsub.s32 %v689, %v691
    %v693 = vrot.slane %v679, %v692
    %v694 = vlaneseq
    %v695 = vshrl.u32 %v694, 7
    %v696 = vsub.s32 0, %v695
    %v697 = vrot.slane %v686, %v696
    %v698 = vlaneseq
    %v699 = vshrl.u32 %v698, 7
    %v700 = vsub.s32 0, %v699
    %v701 = vrot.slane %v693, %v700
    %v704 = vmul.f32 %v643, %v697
    %v705 = vmul.f32 %v647, %v697
    %v706 = vmul.f32 %v651, %v697
    %v707 = vmul.f32 %v655, %v697
    %v708 = vmul.f32 %v658, %v701
    %v709 = vmul.f32 %v662, %v701
    %v710 = vmul.f32 %v666, %v701
    %v711 = vmul.f32 %v670, %v701
    %v712 = vsel %vm80, %v704, -inf
    %v713 = vsel %vm80, %v708, -inf
    %v714 = vmax.f32 %v712, %v713
    %v715 = vsel %vm80, %v705, -inf
    %v716 = vsel %vm80, %v709, -inf
    %v717 = vmax.f32 %v715, %v716
    %v718 = vsel %vm80, %v706, -inf
    %v719 = vsel %vm80, %v710, -inf
    %v720 = vmax.f32 %v718, %v719
    %v721 = vsel %vm80, %v707, -inf
    %v722 = vsel %vm80, %v711, -inf
    %v723 = vmax.f32 %v721, %v722
    %v724 = vsub.f32 %v704, %v714
    %v725 = vsub.f32 %v705, %v717
    %v726 = vsub.f32 %v706, %v720
    %v727 = vsub.f32 %v707, %v723
    %v728 = vsub.f32 %v708, %v714
    %v729 = vsub.f32 %v709, %v717
    %v730 = vsub.f32 %v710, %v720
    %v731 = vsub.f32 %v711, %v723
    %v732 = vmul.f32 %v724, 1.442695
    %v733 = vpow.pop %v732
    %v734 = vmul.f32 %v725, 1.442695
    %v735 = vpow.pop %v734
    %v736 = vmul.f32 %v726, 1.442695
    %v737 = vpow.pop %v736
    %v738 = vmul.f32 %v727, 1.442695
    %v739 = vpow.pop %v738
    %v740 = vmul.f32 %v728, 1.442695
    %v741 = vpow.pop %v740
    %v742 = vmul.f32 %v729, 1.442695
    %v743 = vpow.pop %v742
    %v744 = vmul.f32 %v730, 1.442695
    %v745 = vpow.pop %v744
    %v746 = vmul.f32 %v731, 1.442695
    %v747 = vpow.pop %v746
    %v748 = vsel %vm80, %v733, 0.0
    %v749 = vsel %vm80, %v741, 0.0
    %v750 = vadd.f32 %v748, %v749
    %v751 = vsel %vm80, %v735, 0.0
    %v752 = vsel %vm80, %v743, 0.0
    %v753 = vadd.f32 %v751, %v752
    %v754 = vsel %vm80, %v737, 0.0
    %v755 = vsel %vm80, %v745, 0.0
    %v756 = vadd.f32 %v754, %v755
    %v757 = vsel %vm80, %v739, 0.0
    %v758 = vsel %vm80, %v747, 0.0
    %v759 = vadd.f32 %v757, %v758
    %v760 = vrcp.pop %v750
    %v761 = vmul.f32 %v733, %v760
    %v762 = vrcp.pop %v753
    %v763 = vmul.f32 %v735, %v762
    %v764 = vrcp.pop %v756
    %v765 = vmul.f32 %v737, %v764
    %v766 = vrcp.pop %v759
    %v767 = vmul.f32 %v739, %v766
    %v768 = vmul.f32 %v741, %v760
    %v769 = vmul.f32 %v743, %v762
    %v770 = vmul.f32 %v745, %v764
    %v771 = vmul.f32 %v747, %v766
    %v773 = vsel %vm80, %v74, 0
    %775 = vmatprep.subr.mxu0 0.0
    %v776 = vand.u32 %v761, 4294901760
    %777 = vmatpush1.msra.mxu0 %v776
    %778 = vmatprep.subr.mxu0 0.0
    %v779 = vand.u32 %v763, 4294901760
    %780 = vmatpush1.msra.mxu0 %v779
    %781 = vmatprep.subr.mxu0 0.0
    %v782 = vand.u32 %v765, 4294901760
    %783 = vmatpush1.msra.mxu0 %v782
    %784 = vmatprep.subr.mxu0 0.0
    %v785 = vand.u32 %v767, 4294901760
    %786 = vmatpush1.msra.mxu0 %v785
    %787 = vmatprep.subr.mxu0 0.0
    %788 = vmatpush1.msra.mxu0 0.0
    %789 = vmatprep.subr.mxu0 0.0
    %790 = vmatpush1.msra.mxu0 0.0
    %791 = vmatprep.subr.mxu0 0.0
    %792 = vmatpush1.msra.mxu0 0.0
    %793 = vmatprep.subr.mxu0 0.0
    %794 = vmatpush1.msra.mxu0 0.0
    %795 = vmatprep.subr.mxu0 0.0
    %796 = vmatpush1.msra.mxu0 0.0
    %797 = vmatprep.subr.mxu0 0.0
    %798 = vmatpush1.msra.mxu0 0.0
    %799 = vmatprep.subr.mxu0 0.0
    %800 = vmatpush1.msra.mxu0 0.0
    %801 = vmatprep.subr.mxu0 0.0
    %802 = vmatpush1.msra.mxu0 0.0
    %803 = vmatprep.subr.mxu0 0.0
    %804 = vmatpush1.msra.mxu0 0.0
    %805 = vmatprep.subr.mxu0 0.0
    %806 = vmatpush1.msra.mxu0 0.0
    %807 = vmatprep.subr.mxu0 0.0
    %808 = vmatpush1.msra.mxu0 0.0
    %809 = vmatprep.subr.mxu0 0.0
    %810 = vmatpush1.msra.mxu0 0.0
    %811 = vmatprep.subr.mxu0 0.0
    %812 = vmatpush1.msra.mxu0 0.0
    %813 = vmatprep.subr.mxu0 0.0
    %814 = vmatpush1.msra.mxu0 0.0
    %815 = vmatprep.subr.mxu0 0.0
    %816 = vmatpush1.msra.mxu0 0.0
    %817 = vmatprep.subr.mxu0 0.0
    %818 = vmatpush1.msra.mxu0 0.0
    %819 = vmatprep.subr.mxu0 0.0
    %820 = vmatpush1.msra.mxu0 0.0
    %821 = vmatprep.subr.mxu0 0.0
    %822 = vmatpush1.msra.mxu0 0.0
    %823 = vmatprep.subr.mxu0 0.0
    %824 = vmatpush1.msra.mxu0 0.0
    %825 = vmatprep.subr.mxu0 0.0
    %826 = vmatpush1.msra.mxu0 0.0
    %827 = vmatprep.subr.mxu0 0.0
    %828 = vmatpush1.msra.mxu0 0.0
    %829 = vmatprep.subr.mxu0 0.0
    %830 = vmatpush1.msra.mxu0 0.0
    %831 = vmatprep.subr.mxu0 0.0
    %832 = vmatpush1.msra.mxu0 0.0
    %833 = vmatprep.subr.mxu0 0.0
    %834 = vmatpush1.msra.mxu0 0.0
    %835 = vmatprep.subr.mxu0 0.0
    %836 = vmatpush1.msra.mxu0 0.0
    %837 = vmatprep.subr.mxu0 0.0
    %838 = vmatpush1.msra.mxu0 0.0
    %839 = vmatprep.subr.mxu0 0.0
    %840 = vmatpush1.msra.mxu0 0.0
    %841 = vmatprep.subr.mxu0 0.0
    %842 = vmatpush1.msra.mxu0 0.0
    %843 = vmatprep.mubr.f32.mxu0 0.0
    %v844 = vand.u32 %v773, 4294901760
    %v845 = vsub.f32 %v773, %v844
    %v846 = vand.u32 %v845, 4294901760
    %v847 = vsub.f32 %v845, %v846
    %v848 = vand.u32 %v847, 4294901760
    %849 = vmatmul.mubr.f32.gmra.mrb[0].mxu0 %v848
    %v850 = vpop.f32.mrb[0].mxu0
    %v851 = vadd.f32 0.0, %v850
    %v852 = vpop.f32.mrb[0].mxu0
    %853 = vdwg.mxu0
    %854 = vmatprep.subr.mxu0 0.0
    %v855 = vand.u32 %v761, 4294901760
    %v856 = vsub.f32 %v761, %v855
    %v857 = vand.u32 %v856, 4294901760
    %v858 = vsub.f32 %v856, %v857
    %v859 = vand.u32 %v858, 4294901760
    %860 = vmatpush1.msra.mxu0 %v859
    %861 = vmatprep.subr.mxu0 0.0
    %v862 = vand.u32 %v763, 4294901760
    %v863 = vsub.f32 %v763, %v862
    %v864 = vand.u32 %v863, 4294901760
    %v865 = vsub.f32 %v863, %v864
    %v866 = vand.u32 %v865, 4294901760
    %867 = vmatpush1.msra.mxu0 %v866
    %868 = vmatprep.subr.mxu0 0.0
    %v869 = vand.u32 %v765, 4294901760
    %v870 = vsub.f32 %v765, %v869
    %v871 = vand.u32 %v870, 4294901760
    %v872 = vsub.f32 %v870, %v871
    %v873 = vand.u32 %v872, 4294901760
    %874 = vmatpush1.msra.mxu0 %v873
    %875 = vmatprep.subr.mxu0 0.0
    %v876 = vand.u32 %v767, 4294901760
    %v877 = vsub.f32 %v767, %v876
    %v878 = vand.u32 %v877, 4294901760
    %v879 = vsub.f32 %v877, %v878
    %v880 = vand.u32 %v879, 4294901760
    %881 = vmatpush1.msra.mxu0 %v880
    %882 = vmatprep.subr.mxu0 0.0
    %883 = vmatpush1.msra.mxu0 0.0
    %884 = vmatprep.subr.mxu0 0.0
    %885 = vmatpush1.msra.mxu0 0.0
    %886 = vmatprep.subr.mxu0 0.0
    %887 = vmatpush1.msra.mxu0 0.0
    %888 = vmatprep.subr.mxu0 0.0
    %889 = vmatpush1.msra.mxu0 0.0
    %890 = vmatprep.subr.mxu0 0.0
    %891 = vmatpush1.msra.mxu0 0.0
    %892 = vmatprep.subr.mxu0 0.0
    %893 = vmatpush1.msra.mxu0 0.0
    %894 = vmatprep.subr.mxu0 0.0
    %895 = vmatpush1.msra.mxu0 0.0
    %896 = vmatprep.subr.mxu0 0.0
    %897 = vmatpush1.msra.mxu0 0.0
    %898 = vmatprep.subr.mxu0 0.0
    %899 = vmatpush1.msra.mxu0 0.0
    %900 = vmatprep.subr.mxu0 0.0
    %901 = vmatpush1.msra.mxu0 0.0
    %902 = vmatprep.subr.mxu0 0.0
    %903 = vmatpush1.msra.mxu0 0.0
    %904 = vmatprep.subr.mxu0 0.0
    %905 = vmatpush1.msra.mxu0 0.0
    %906 = vmatprep.subr.mxu0 0.0
    %907 = vmatpush1.msra.mxu0 0.0
    %908 = vmatprep.subr.mxu0 0.0
    %909 = vmatpush1.msra.mxu0 0.0
    %910 = vmatprep.subr.mxu0 0.0
    %911 = vmatpush1.msra.mxu0 0.0
    %912 = vmatprep.subr.mxu0 0.0
    %913 = vmatpush1.msra.mxu0 0.0
    %914 = vmatprep.subr.mxu0 0.0
    %915 = vmatpush1.msra.mxu0 0.0
    %916 = vmatprep.subr.mxu0 0.0
    %917 = vmatpush1.msra.mxu0 0.0
    %918 = vmatprep.subr.mxu0 0.0
    %919 = vmatpush1.msra.mxu0 0.0
    %920 = vmatprep.subr.mxu0 0.0
    %921 = vmatpush1.msra.mxu0 0.0
    %922 = vmatprep.subr.mxu0 0.0
    %923 = vmatpush1.msra.mxu0 0.0
    %924 = vmatprep.subr.mxu0 0.0
    %925 = vmatpush1.msra.mxu0 0.0
    %926 = vmatprep.subr.mxu0 0.0
    %927 = vmatpush1.msra.mxu0 0.0
    %928 = vmatprep.subr.mxu0 0.0
    %929 = vmatpush1.msra.mxu0 0.0
    %930 = vmatprep.subr.mxu0 0.0
    %931 = vmatpush1.msra.mxu0 0.0
    %932 = vmatprep.subr.mxu0 0.0
    %933 = vmatpush1.msra.mxu0 0.0
    %934 = vmatprep.subr.mxu0 0.0
    %935 = vmatpush1.msra.mxu0 0.0
    %936 = vmatprep.subr.mxu0 0.0
    %937 = vmatpush1.msra.mxu0 0.0
    %938 = vmatprep.mubr.f32.mxu0 0.0
    %v939 = vand.u32 %v773, 4294901760
    %940 = vmatmul.mubr.f32.gmra.mrb[0].mxu0 %v939
    %v941 = vpop.f32.mrb[0].mxu0
    %v942 = vadd.f32 %v851, %v941
    %v943 = vpop.f32.mrb[0].mxu0
    %944 = vdwg.mxu0
    %945 = vmatprep.subr.mxu0 0.0
    %v946 = vand.u32 %v761, 4294901760
    %v947 = vsub.f32 %v761, %v946
    %948 = vmatpush1.msra.mxu0 %v947
    %949 = vmatprep.subr.mxu0 0.0
    %v950 = vand.u32 %v763, 4294901760
    %v951 = vsub.f32 %v763, %v950
    %952 = vmatpush1.msra.mxu0 %v951
    %953 = vmatprep.subr.mxu0 0.0
    %v954 = vand.u32 %v765, 4294901760
    %v955 = vsub.f32 %v765, %v954
    %956 = vmatpush1.msra.mxu0 %v955
    %957 = vmatprep.subr.mxu0 0.0
    %v958 = vand.u32 %v767, 4294901760
    %v959 = vsub.f32 %v767, %v958
    %960 = vmatpush1.msra.mxu0 %v959
    %961 = vmatprep.subr.mxu0 0.0
    %962 = vmatpush1.msra.mxu0 0.0
    %963 = vmatprep.subr.mxu0 0.0
    %964 = vmatpush1.msra.mxu0 0.0
    %965 = vmatprep.subr.mxu0 0.0
    %966 = vmatpush1.msra.mxu0 0.0
    %967 = vmatprep.subr.mxu0 0.0
    %968 = vmatpush1.msra.mxu0 0.0
    %969 = vmatprep.subr.mxu0 0.0
    %970 = vmatpush1.msra.mxu0 0.0
    %971 = vmatprep.subr.mxu0 0.0
    %972 = vmatpush1.msra.mxu0 0.0
    %973 = vmatprep.subr.mxu0 0.0
    %974 = vmatpush1.msra.mxu0 0.0
    %975 = vmatprep.subr.mxu0 0.0
    %976 = vmatpush1.msra.mxu0 0.0
    %977 = vmatprep.subr.mxu0 0.0
    %978 = vmatpush1.msra.mxu0 0.0
    %979 = vmatprep.subr.mxu0 0.0
    %980 = vmatpush1.msra.mxu0 0.0
    %981 = vmatprep.subr.mxu0 0.0
    %982 = vmatpush1.msra.mxu0 0.0
    %983 = vmatprep.subr.mxu0 0.0
    %984 = vmatpush1.msra.mxu0 0.0
    %985 = vmatprep.subr.mxu0 0.0
    %986 = vmatpush1.msra.mxu0 0.0
    %987 = vmatprep.subr.mxu0 0.0
    %988 = vmatpush1.msra.mxu0 0.0
    %989 = vmatprep.subr.mxu0 0.0
    %990 = vmatpush1.msra.mxu0 0.0
    %991 = vmatprep.subr.mxu0 0.0
    %992 = vmatpush1.msra.mxu0 0.0
    %993 = vmatprep.subr.mxu0 0.0
    %994 = vmatpush1.msra.mxu0 0.0
    %995 = vmatprep.subr.mxu0 0.0
    %996 = vmatpush1.msra.mxu0 0.0
    %997 = vmatprep.subr.mxu0 0.0
    %998 = vmatpush1.msra.mxu0 0.0
    %999 = vmatprep.subr.mxu0 0.0
    %1000 = vmatpush1.msra.mxu0 0.0
    %1001 = vmatprep.subr.mxu0 0.0
    %1002 = vmatpush1.msra.mxu0 0.0
    %1003 = vmatprep.subr.mxu0 0.0
    %1004 = vmatpush1.msra.mxu0 0.0
    %1005 = vmatprep.subr.mxu0 0.0
    %1006 = vmatpush1.msra.mxu0 0.0
    %1007 = vmatprep.subr.mxu0 0.0
    %1008 = vmatpush1.msra.mxu0 0.0
    %1009 = vmatprep.subr.mxu0 0.0
    %1010 = vmatpush1.msra.mxu0 0.0
    %1011 = vmatprep.subr.mxu0 0.0
    %1012 = vmatpush1.msra.mxu0 0.0
    %1013 = vmatprep.subr.mxu0 0.0
    %1014 = vmatpush1.msra.mxu0 0.0
    %1015 = vmatprep.subr.mxu0 0.0
    %1016 = vmatpush1.msra.mxu0 0.0
    %1017 = vmatprep.mubr.f32.mxu0 0.0
    %v1018 = vand.u32 %v773, 4294901760
    %v1019 = vsub.f32 %v773, %v1018
    %1020 = vmatmul.mubr.f32.gmra.mrb[0].mxu0 %v1019
    %v1021 = vpop.f32.mrb[0].mxu0
    %v1022 = vadd.f32 %v942, %v1021
    %v1023 = vpop.f32.mrb[0].mxu0
    %1024 = vdwg.mxu0
    %1025 = vmatprep.subr.mxu0 0.0
    %v1026 = vand.u32 %v761, 4294901760
    %1027 = vmatpush1.msra.mxu0 %v1026
    %1028 = vmatprep.subr.mxu0 0.0
    %v1029 = vand.u32 %v763, 4294901760
    %1030 = vmatpush1.msra.mxu0 %v1029
    %1031 = vmatprep.subr.mxu0 0.0
    %v1032 = vand.u32 %v765, 4294901760
    %1033 = vmatpush1.msra.mxu0 %v1032
    %1034 = vmatprep.subr.mxu0 0.0
    %v1035 = vand.u32 %v767, 4294901760
    %1036 = vmatpush1.msra.mxu0 %v1035
    %1037 = vmatprep.subr.mxu0 0.0
    %1038 = vmatpush1.msra.mxu0 0.0
    %1039 = vmatprep.subr.mxu0 0.0
    %1040 = vmatpush1.msra.mxu0 0.0
    %1041 = vmatprep.subr.mxu0 0.0
    %1042 = vmatpush1.msra.mxu0 0.0
    %1043 = vmatprep.subr.mxu0 0.0
    %1044 = vmatpush1.msra.mxu0 0.0
    %1045 = vmatprep.subr.mxu0 0.0
    %1046 = vmatpush1.msra.mxu0 0.0
    %1047 = vmatprep.subr.mxu0 0.0
    %1048 = vmatpush1.msra.mxu0 0.0
    %1049 = vmatprep.subr.mxu0 0.0
    %1050 = vmatpush1.msra.mxu0 0.0
    %1051 = vmatprep.subr.mxu0 0.0
    %1052 = vmatpush1.msra.mxu0 0.0
    %1053 = vmatprep.subr.mxu0 0.0
    %1054 = vmatpush1.msra.mxu0 0.0
    %1055 = vmatprep.subr.mxu0 0.0
    %1056 = vmatpush1.msra.mxu0 0.0
    %1057 = vmatprep.subr.mxu0 0.0
    %1058 = vmatpush1.msra.mxu0 0.0
    %1059 = vmatprep.subr.mxu0 0.0
    %1060 = vmatpush1.msra.mxu0 0.0
    %1061 = vmatprep.subr.mxu0 0.0
    %1062 = vmatpush1.msra.mxu0 0.0
    %1063 = vmatprep.subr.mxu0 0.0
    %1064 = vmatpush1.msra.mxu0 0.0
    %1065 = vmatprep.subr.mxu0 0.0
    %1066 = vmatpush1.msra.mxu0 0.0
    %1067 = vmatprep.subr.mxu0 0.0
    %1068 = vmatpush1.msra.mxu0 0.0
    %1069 = vmatprep.subr.mxu0 0.0
    %1070 = vmatpush1.msra.mxu0 0.0
    %1071 = vmatprep.subr.mxu0 0.0
    %1072 = vmatpush1.msra.mxu0 0.0
    %1073 = vmatprep.subr.mxu0 0.0
    %1074 = vmatpush1.msra.mxu0 0.0
    %1075 = vmatprep.subr.mxu0 0.0
    %1076 = vmatpush1.msra.mxu0 0.0
    %1077 = vmatprep.subr.mxu0 0.0
    %1078 = vmatpush1.msra.mxu0 0.0
    %1079 = vmatprep.subr.mxu0 0.0
    %1080 = vmatpush1.msra.mxu0 0.0
    %1081 = vmatprep.subr.mxu0 0.0
    %1082 = vmatpush1.msra.mxu0 0.0
    %1083 = vmatprep.subr.mxu0 0.0
    %1084 = vmatpush1.msra.mxu0 0.0
    %1085 = vmatprep.subr.mxu0 0.0
    %1086 = vmatpush1.msra.mxu0 0.0
    %1087 = vmatprep.subr.mxu0 0.0
    %1088 = vmatpush1.msra.mxu0 0.0
    %1089 = vmatprep.subr.mxu0 0.0
    %1090 = vmatpush1.msra.mxu0 0.0
    %1091 = vmatprep.subr.mxu0 0.0
    %1092 = vmatpush1.msra.mxu0 0.0
    %1093 = vmatprep.mubr.f32.mxu0 0.0
    %v1094 = vand.u32 %v773, 4294901760
    %v1095 = vsub.f32 %v773, %v1094
    %v1096 = vand.u32 %v1095, 4294901760
    %1097 = vmatmul.mubr.f32.gmra.mrb[0].mxu0 %v1096
    %v1098 = vpop.f32.mrb[0].mxu0
    %v1099 = vadd.f32 %v1022, %v1098
    %v1100 = vpop.f32.mrb[0].mxu0
    %1101 = vdwg.mxu0
    %1102 = vmatprep.subr.mxu0 0.0
    %v1103 = vand.u32 %v761, 4294901760
    %v1104 = vsub.f32 %v761, %v1103
    %v1105 = vand.u32 %v1104, 4294901760
    %1106 = vmatpush1.msra.mxu0 %v1105
    %1107 = vmatprep.subr.mxu0 0.0
    %v1108 = vand.u32 %v763, 4294901760
    %v1109 = vsub.f32 %v763, %v1108
    %v1110 = vand.u32 %v1109, 4294901760
    %1111 = vmatpush1.msra.mxu0 %v1110
    %1112 = vmatprep.subr.mxu0 0.0
    %v1113 = vand.u32 %v765, 4294901760
    %v1114 = vsub.f32 %v765, %v1113
    %v1115 = vand.u32 %v1114, 4294901760
    %1116 = vmatpush1.msra.mxu0 %v1115
    %1117 = vmatprep.subr.mxu0 0.0
    %v1118 = vand.u32 %v767, 4294901760
    %v1119 = vsub.f32 %v767, %v1118
    %v1120 = vand.u32 %v1119, 4294901760
    %1121 = vmatpush1.msra.mxu0 %v1120
    %1122 = vmatprep.subr.mxu0 0.0
    %1123 = vmatpush1.msra.mxu0 0.0
    %1124 = vmatprep.subr.mxu0 0.0
    %1125 = vmatpush1.msra.mxu0 0.0
    %1126 = vmatprep.subr.mxu0 0.0
    %1127 = vmatpush1.msra.mxu0 0.0
    %1128 = vmatprep.subr.mxu0 0.0
    %1129 = vmatpush1.msra.mxu0 0.0
    %1130 = vmatprep.subr.mxu0 0.0
    %1131 = vmatpush1.msra.mxu0 0.0
    %1132 = vmatprep.subr.mxu0 0.0
    %1133 = vmatpush1.msra.mxu0 0.0
    %1134 = vmatprep.subr.mxu0 0.0
    %1135 = vmatpush1.msra.mxu0 0.0
    %1136 = vmatprep.subr.mxu0 0.0
    %1137 = vmatpush1.msra.mxu0 0.0
    %1138 = vmatprep.subr.mxu0 0.0
    %1139 = vmatpush1.msra.mxu0 0.0
    %1140 = vmatprep.subr.mxu0 0.0
    %1141 = vmatpush1.msra.mxu0 0.0
    %1142 = vmatprep.subr.mxu0 0.0
    %1143 = vmatpush1.msra.mxu0 0.0
    %1144 = vmatprep.subr.mxu0 0.0
    %1145 = vmatpush1.msra.mxu0 0.0
    %1146 = vmatprep.subr.mxu0 0.0
    %1147 = vmatpush1.msra.mxu0 0.0
    %1148 = vmatprep.subr.mxu0 0.0
    %1149 = vmatpush1.msra.mxu0 0.0
    %1150 = vmatprep.subr.mxu0 0.0
    %1151 = vmatpush1.msra.mxu0 0.0
    %1152 = vmatprep.subr.mxu0 0.0
    %1153 = vmatpush1.msra.mxu0 0.0
    %1154 = vmatprep.subr.mxu0 0.0
    %1155 = vmatpush1.msra.mxu0 0.0
    %1156 = vmatprep.subr.mxu0 0.0
    %1157 = vmatpush1.msra.mxu0 0.0
    %1158 = vmatprep.subr.mxu0 0.0
    %1159 = vmatpush1.msra.mxu0 0.0
    %1160 = vmatprep.subr.mxu0 0.0
    %1161 = vmatpush1.msra.mxu0 0.0
    %1162 = vmatprep.subr.mxu0 0.0
    %1163 = vmatpush1.msra.mxu0 0.0
    %1164 = vmatprep.subr.mxu0 0.0
    %1165 = vmatpush1.msra.mxu0 0.0
    %1166 = vmatprep.subr.mxu0 0.0
    %1167 = vmatpush1.msra.mxu0 0.0
    %1168 = vmatprep.subr.mxu0 0.0
    %1169 = vmatpush1.msra.mxu0 0.0
    %1170 = vmatprep.subr.mxu0 0.0
    %1171 = vmatpush1.msra.mxu0 0.0
    %1172 = vmatprep.subr.mxu0 0.0
    %1173 = vmatpush1.msra.mxu0 0.0
    %1174 = vmatprep.subr.mxu0 0.0
    %1175 = vmatpush1.msra.mxu0 0.0
    %1176 = vmatprep.subr.mxu0 0.0
    %1177 = vmatpush1.msra.mxu0 0.0
    %1178 = vmatprep.mubr.f32.mxu0 0.0
    %v1179 = vand.u32 %v773, 4294901760
    %1180 = vmatmul.mubr.f32.gmra.mrb[0].mxu0 %v1179
    %v1181 = vpop.f32.mrb[0].mxu0
    %v1182 = vadd.f32 %v1099, %v1181
    %v1183 = vpop.f32.mrb[0].mxu0
    %1184 = vdwg.mxu0
    %1185 = vmatprep.subr.mxu0 0.0
    %v1186 = vand.u32 %v761, 4294901760
    %1187 = vmatpush1.msra.mxu0 %v1186
    %1188 = vmatprep.subr.mxu0 0.0
    %v1189 = vand.u32 %v763, 4294901760
    %1190 = vmatpush1.msra.mxu0 %v1189
    %1191 = vmatprep.subr.mxu0 0.0
    %v1192 = vand.u32 %v765, 4294901760
    %1193 = vmatpush1.msra.mxu0 %v1192
    %1194 = vmatprep.subr.mxu0 0.0
    %v1195 = vand.u32 %v767, 4294901760
    %1196 = vmatpush1.msra.mxu0 %v1195
    %1197 = vmatprep.subr.mxu0 0.0
    %1198 = vmatpush1.msra.mxu0 0.0
    %1199 = vmatprep.subr.mxu0 0.0
    %1200 = vmatpush1.msra.mxu0 0.0
    %1201 = vmatprep.subr.mxu0 0.0
    %1202 = vmatpush1.msra.mxu0 0.0
    %1203 = vmatprep.subr.mxu0 0.0
    %1204 = vmatpush1.msra.mxu0 0.0
    %1205 = vmatprep.subr.mxu0 0.0
    %1206 = vmatpush1.msra.mxu0 0.0
    %1207 = vmatprep.subr.mxu0 0.0
    %1208 = vmatpush1.msra.mxu0 0.0
    %1209 = vmatprep.subr.mxu0 0.0
    %1210 = vmatpush1.msra.mxu0 0.0
    %1211 = vmatprep.subr.mxu0 0.0
    %1212 = vmatpush1.msra.mxu0 0.0
    %1213 = vmatprep.subr.mxu0 0.0
    %1214 = vmatpush1.msra.mxu0 0.0
    %1215 = vmatprep.subr.mxu0 0.0
    %1216 = vmatpush1.msra.mxu0 0.0
    %1217 = vmatprep.subr.mxu0 0.0
    %1218 = vmatpush1.msra.mxu0 0.0
    %1219 = vmatprep.subr.mxu0 0.0
    %1220 = vmatpush1.msra.mxu0 0.0
    %1221 = vmatprep.subr.mxu0 0.0
    %1222 = vmatpush1.msra.mxu0 0.0
    %1223 = vmatprep.subr.mxu0 0.0
    %1224 = vmatpush1.msra.mxu0 0.0
    %1225 = vmatprep.subr.mxu0 0.0
    %1226 = vmatpush1.msra.mxu0 0.0
    %1227 = vmatprep.subr.mxu0 0.0
    %1228 = vmatpush1.msra.mxu0 0.0
    %1229 = vmatprep.subr.mxu0 0.0
    %1230 = vmatpush1.msra.mxu0 0.0
    %1231 = vmatprep.subr.mxu0 0.0
    %1232 = vmatpush1.msra.mxu0 0.0
    %1233 = vmatprep.subr.mxu0 0.0
    %1234 = vmatpush1.msra.mxu0 0.0
    %1235 = vmatprep.subr.mxu0 0.0
    %1236 = vmatpush1.msra.mxu0 0.0
    %1237 = vmatprep.subr.mxu0 0.0
    %1238 = vmatpush1.msra.mxu0 0.0
    %1239 = vmatprep.subr.mxu0 0.0
    %1240 = vmatpush1.msra.mxu0 0.0
    %1241 = vmatprep.subr.mxu0 0.0
    %1242 = vmatpush1.msra.mxu0 0.0
    %1243 = vmatprep.subr.mxu0 0.0
    %1244 = vmatpush1.msra.mxu0 0.0
    %1245 = vmatprep.subr.mxu0 0.0
    %1246 = vmatpush1.msra.mxu0 0.0
    %1247 = vmatprep.subr.mxu0 0.0
    %1248 = vmatpush1.msra.mxu0 0.0
    %1249 = vmatprep.subr.mxu0 0.0
    %1250 = vmatpush1.msra.mxu0 0.0
    %1251 = vmatprep.subr.mxu0 0.0
    %1252 = vmatpush1.msra.mxu0 0.0
    %1253 = vmatprep.mubr.f32.mxu0 0.0
    %v1254 = vand.u32 %v773, 4294901760
    %1255 = vmatmul.mubr.f32.gmra.mrb[0].mxu0 %v1254
    %v1256 = vpop.f32.mrb[0].mxu0
    %v1257 = vadd.f32 %v1182, %v1256
    %v1258 = vpop.f32.mrb[0].mxu0
    %1259 = vdwg.mxu0
    %v1261 = vsel %vm80, %v75, 0
    %1263 = vmatprep.subr.mxu0 0.0
    %v1264 = vand.u32 %v768, 4294901760
    %1265 = vmatpush1.msra.mxu0 %v1264
    %1266 = vmatprep.subr.mxu0 0.0
    %v1267 = vand.u32 %v769, 4294901760
    %1268 = vmatpush1.msra.mxu0 %v1267
    %1269 = vmatprep.subr.mxu0 0.0
    %v1270 = vand.u32 %v770, 4294901760
    %1271 = vmatpush1.msra.mxu0 %v1270
    %1272 = vmatprep.subr.mxu0 0.0
    %v1273 = vand.u32 %v771, 4294901760
    %1274 = vmatpush1.msra.mxu0 %v1273
    %1275 = vmatprep.subr.mxu0 0.0
    %1276 = vmatpush1.msra.mxu0 0.0
    %1277 = vmatprep.subr.mxu0 0.0
    %1278 = vmatpush1.msra.mxu0 0.0
    %1279 = vmatprep.subr.mxu0 0.0
    %1280 = vmatpush1.msra.mxu0 0.0
    %1281 = vmatprep.subr.mxu0 0.0
    %1282 = vmatpush1.msra.mxu0 0.0
    %1283 = vmatprep.subr.mxu0 0.0
    %1284 = vmatpush1.msra.mxu0 0.0
    %1285 = vmatprep.subr.mxu0 0.0
    %1286 = vmatpush1.msra.mxu0 0.0
    %1287 = vmatprep.subr.mxu0 0.0
    %1288 = vmatpush1.msra.mxu0 0.0
    %1289 = vmatprep.subr.mxu0 0.0
    %1290 = vmatpush1.msra.mxu0 0.0
    %1291 = vmatprep.subr.mxu0 0.0
    %1292 = vmatpush1.msra.mxu0 0.0
    %1293 = vmatprep.subr.mxu0 0.0
    %1294 = vmatpush1.msra.mxu0 0.0
    %1295 = vmatprep.subr.mxu0 0.0
    %1296 = vmatpush1.msra.mxu0 0.0
    %1297 = vmatprep.subr.mxu0 0.0
    %1298 = vmatpush1.msra.mxu0 0.0
    %1299 = vmatprep.subr.mxu0 0.0
    %1300 = vmatpush1.msra.mxu0 0.0
    %1301 = vmatprep.subr.mxu0 0.0
    %1302 = vmatpush1.msra.mxu0 0.0
    %1303 = vmatprep.subr.mxu0 0.0
    %1304 = vmatpush1.msra.mxu0 0.0
    %1305 = vmatprep.subr.mxu0 0.0
    %1306 = vmatpush1.msra.mxu0 0.0
    %1307 = vmatprep.subr.mxu0 0.0
    %1308 = vmatpush1.msra.mxu0 0.0
    %1309 = vmatprep.subr.mxu0 0.0
    %1310 = vmatpush1.msra.mxu0 0.0
    %1311 = vmatprep.subr.mxu0 0.0
    %1312 = vmatpush1.msra.mxu0 0.0
    %1313 = vmatprep.subr.mxu0 0.0
    %1314 = vmatpush1.msra.mxu0 0.0
    %1315 = vmatprep.subr.mxu0 0.0
    %1316 = vmatpush1.msra.mxu0 0.0
    %1317 = vmatprep.subr.mxu0 0.0
    %1318 = vmatpush1.msra.mxu0 0.0
    %1319 = vmatprep.subr.mxu0 0.0
    %1320 = vmatpush1.msra.mxu0 0.0
    %1321 = vmatprep.subr.mxu0 0.0
    %1322 = vmatpush1.msra.mxu0 0.0
    %1323 = vmatprep.subr.mxu0 0.0
    %1324 = vmatpush1.msra.mxu0 0.0
    %1325 = vmatprep.subr.mxu0 0.0
    %1326 = vmatpush1.msra.mxu0 0.0
    %1327 = vmatprep.subr.mxu0 0.0
    %1328 = vmatpush1.msra.mxu0 0.0
    %1329 = vmatprep.subr.mxu0 0.0
    %1330 = vmatpush1.msra.mxu0 0.0
    %1331 = vmatprep.mubr.f32.mxu0 0.0
    %v1332 = vand.u32 %v1261, 4294901760
    %v1333 = vsub.f32 %v1261, %v1332
    %v1334 = vand.u32 %v1333, 4294901760
    %v1335 = vsub.f32 %v1333, %v1334
    %v1336 = vand.u32 %v1335, 4294901760
    %1337 = vmatmul.mubr.f32.gmra.mrb[0].mxu0 %v1336
    %v1338 = vpop.f32.mrb[0].mxu0
    %v1339 = vadd.f32 0.0, %v1338
    %v1340 = vpop.f32.mrb[0].mxu0
    %1341 = vdwg.mxu0
    %1342 = vmatprep.subr.mxu0 0.0
    %v1343 = vand.u32 %v768, 4294901760
    %v1344 = vsub.f32 %v768, %v1343
    %v1345 = vand.u32 %v1344, 4294901760
    %v1346 = vsub.f32 %v1344, %v1345
    %v1347 = vand.u32 %v1346, 4294901760
    %1348 = vmatpush1.msra.mxu0 %v1347
    %1349 = vmatprep.subr.mxu0 0.0
    %v1350 = vand.u32 %v769, 4294901760
    %v1351 = vsub.f32 %v769, %v1350
    %v1352 = vand.u32 %v1351, 4294901760
    %v1353 = vsub.f32 %v1351, %v1352
    %v1354 = vand.u32 %v1353, 4294901760
    %1355 = vmatpush1.msra.mxu0 %v1354
    %1356 = vmatprep.subr.mxu0 0.0
    %v1357 = vand.u32 %v770, 4294901760
    %v1358 = vsub.f32 %v770, %v1357
    %v1359 = vand.u32 %v1358, 4294901760
    %v1360 = vsub.f32 %v1358, %v1359
    %v1361 = vand.u32 %v1360, 4294901760
    %1362 = vmatpush1.msra.mxu0 %v1361
    %1363 = vmatprep.subr.mxu0 0.0
    %v1364 = vand.u32 %v771, 4294901760
    %v1365 = vsub.f32 %v771, %v1364
    %v1366 = vand.u32 %v1365, 4294901760
    %v1367 = vsub.f32 %v1365, %v1366
    %v1368 = vand.u32 %v1367, 4294901760
    %1369 = vmatpush1.msra.mxu0 %v1368
    %1370 = vmatprep.subr.mxu0 0.0
    %1371 = vmatpush1.msra.mxu0 0.0
    %1372 = vmatprep.subr.mxu0 0.0
    %1373 = vmatpush1.msra.mxu0 0.0
    %1374 = vmatprep.subr.mxu0 0.0
    %1375 = vmatpush1.msra.mxu0 0.0
    %1376 = vmatprep.subr.mxu0 0.0
    %1377 = vmatpush1.msra.mxu0 0.0
    %1378 = vmatprep.subr.mxu0 0.0
    %1379 = vmatpush1.msra.mxu0 0.0
    %1380 = vmatprep.subr.mxu0 0.0
    %1381 = vmatpush1.msra.mxu0 0.0
    %1382 = vmatprep.subr.mxu0 0.0
    %1383 = vmatpush1.msra.mxu0 0.0
    %1384 = vmatprep.subr.mxu0 0.0
    %1385 = vmatpush1.msra.mxu0 0.0
    %1386 = vmatprep.subr.mxu0 0.0
    %1387 = vmatpush1.msra.mxu0 0.0
    %1388 = vmatprep.subr.mxu0 0.0
    %1389 = vmatpush1.msra.mxu0 0.0
    %1390 = vmatprep.subr.mxu0 0.0
    %1391 = vmatpush1.msra.mxu0 0.0
    %1392 = vmatprep.subr.mxu0 0.0
    %1393 = vmatpush1.msra.mxu0 0.0
    %1394 = vmatprep.subr.mxu0 0.0
    %1395 = vmatpush1.msra.mxu0 0.0
    %1396 = vmatprep.subr.mxu0 0.0
    %1397 = vmatpush1.msra.mxu0 0.0
    %1398 = vmatprep.subr.mxu0 0.0
    %1399 = vmatpush1.msra.mxu0 0.0
    %1400 = vmatprep.subr.mxu0 0.0
    %1401 = vmatpush1.msra.mxu0 0.0
    %1402 = vmatprep.subr.mxu0 0.0
    %1403 = vmatpush1.msra.mxu0 0.0
    %1404 = vmatprep.subr.mxu0 0.0
    %1405 = vmatpush1.msra.mxu0 0.0
    %1406 = vmatprep.subr.mxu0 0.0
    %1407 = vmatpush1.msra.mxu0 0.0
    %1408 = vmatprep.subr.mxu0 0.0
    %1409 = vmatpush1.msra.mxu0 0.0
    %1410 = vmatprep.subr.mxu0 0.0
    %1411 = vmatpush1.msra.mxu0 0.0
    %1412 = vmatprep.subr.mxu0 0.0
    %1413 = vmatpush1.msra.mxu0 0.0
    %1414 = vmatprep.subr.mxu0 0.0
    %1415 = vmatpush1.msra.mxu0 0.0
    %1416 = vmatprep.subr.mxu0 0.0
    %1417 = vmatpush1.msra.mxu0 0.0
    %1418 = vmatprep.subr.mxu0 0.0
    %1419 = vmatpush1.msra.mxu0 0.0
    %1420 = vmatprep.subr.mxu0 0.0
    %1421 = vmatpush1.msra.mxu0 0.0
    %1422 = vmatprep.subr.mxu0 0.0
    %1423 = vmatpush1.msra.mxu0 0.0
    %1424 = vmatprep.subr.mxu0 0.0
    %1425 = vmatpush1.msra.mxu0 0.0
    %1426 = vmatprep.mubr.f32.mxu0 0.0
    %v1427 = vand.u32 %v1261, 4294901760
    %1428 = vmatmul.mubr.f32.gmra.mrb[0].mxu0 %v1427
    %v1429 = vpop.f32.mrb[0].mxu0
    %v1430 = vadd.f32 %v1339, %v1429
    %v1431 = vpop.f32.mrb[0].mxu0
    %1432 = vdwg.mxu0
    %1433 = vmatprep.subr.mxu0 0.0
    %v1434 = vand.u32 %v768, 4294901760
    %v1435 = vsub.f32 %v768, %v1434
    %1436 = vmatpush1.msra.mxu0 %v1435
    %1437 = vmatprep.subr.mxu0 0.0
    %v1438 = vand.u32 %v769, 4294901760
    %v1439 = vsub.f32 %v769, %v1438
    %1440 = vmatpush1.msra.mxu0 %v1439
    %1441 = vmatprep.subr.mxu0 0.0
    %v1442 = vand.u32 %v770, 4294901760
    %v1443 = vsub.f32 %v770, %v1442
    %1444 = vmatpush1.msra.mxu0 %v1443
    %1445 = vmatprep.subr.mxu0 0.0
    %v1446 = vand.u32 %v771, 4294901760
    %v1447 = vsub.f32 %v771, %v1446
    %1448 = vmatpush1.msra.mxu0 %v1447
    %1449 = vmatprep.subr.mxu0 0.0
    %1450 = vmatpush1.msra.mxu0 0.0
    %1451 = vmatprep.subr.mxu0 0.0
    %1452 = vmatpush1.msra.mxu0 0.0
    %1453 = vmatprep.subr.mxu0 0.0
    %1454 = vmatpush1.msra.mxu0 0.0
    %1455 = vmatprep.subr.mxu0 0.0
    %1456 = vmatpush1.msra.mxu0 0.0
    %1457 = vmatprep.subr.mxu0 0.0
    %1458 = vmatpush1.msra.mxu0 0.0
    %1459 = vmatprep.subr.mxu0 0.0
    %1460 = vmatpush1.msra.mxu0 0.0
    %1461 = vmatprep.subr.mxu0 0.0
    %1462 = vmatpush1.msra.mxu0 0.0
    %1463 = vmatprep.subr.mxu0 0.0
    %1464 = vmatpush1.msra.mxu0 0.0
    %1465 = vmatprep.subr.mxu0 0.0
    %1466 = vmatpush1.msra.mxu0 0.0
    %1467 = vmatprep.subr.mxu0 0.0
    %1468 = vmatpush1.msra.mxu0 0.0
    %1469 = vmatprep.subr.mxu0 0.0
    %1470 = vmatpush1.msra.mxu0 0.0
    %1471 = vmatprep.subr.mxu0 0.0
    %1472 = vmatpush1.msra.mxu0 0.0
    %1473 = vmatprep.subr.mxu0 0.0
    %1474 = vmatpush1.msra.mxu0 0.0
    %1475 = vmatprep.subr.mxu0 0.0
    %1476 = vmatpush1.msra.mxu0 0.0
    %1477 = vmatprep.subr.mxu0 0.0
    %1478 = vmatpush1.msra.mxu0 0.0
    %1479 = vmatprep.subr.mxu0 0.0
    %1480 = vmatpush1.msra.mxu0 0.0
    %1481 = vmatprep.subr.mxu0 0.0
    %1482 = vmatpush1.msra.mxu0 0.0
    %1483 = vmatprep.subr.mxu0 0.0
    %1484 = vmatpush1.msra.mxu0 0.0
    %1485 = vmatprep.subr.mxu0 0.0
    %1486 = vmatpush1.msra.mxu0 0.0
    %1487 = vmatprep.subr.mxu0 0.0
    %1488 = vmatpush1.msra.mxu0 0.0
    %1489 = vmatprep.subr.mxu0 0.0
    %1490 = vmatpush1.msra.mxu0 0.0
    %1491 = vmatprep.subr.mxu0 0.0
    %1492 = vmatpush1.msra.mxu0 0.0
    %1493 = vmatprep.subr.mxu0 0.0
    %1494 = vmatpush1.msra.mxu0 0.0
    %1495 = vmatprep.subr.mxu0 0.0
    %1496 = vmatpush1.msra.mxu0 0.0
    %1497 = vmatprep.subr.mxu0 0.0
    %1498 = vmatpush1.msra.mxu0 0.0
    %1499 = vmatprep.subr.mxu0 0.0
    %1500 = vmatpush1.msra.mxu0 0.0
    %1501 = vmatprep.subr.mxu0 0.0
    %1502 = vmatpush1.msra.mxu0 0.0
    %1503 = vmatprep.subr.mxu0 0.0
    %1504 = vmatpush1.msra.mxu0 0.0
    %1505 = vmatprep.mubr.f32.mxu0 0.0
    %v1506 = vand.u32 %v1261, 4294901760
    %v1507 = vsub.f32 %v1261, %v1506
    %1508 = vmatmul.mubr.f32.gmra.mrb[0].mxu0 %v1507
    %v1509 = vpop.f32.mrb[0].mxu0
    %v1510 = vadd.f32 %v1430, %v1509
    %v1511 = vpop.f32.mrb[0].mxu0
    %1512 = vdwg.mxu0
    %1513 = vmatprep.subr.mxu0 0.0
    %v1514 = vand.u32 %v768, 4294901760
    %1515 = vmatpush1.msra.mxu0 %v1514
    %1516 = vmatprep.subr.mxu0 0.0
    %v1517 = vand.u32 %v769, 4294901760
    %1518 = vmatpush1.msra.mxu0 %v1517
    %1519 = vmatprep.subr.mxu0 0.0
    %v1520 = vand.u32 %v770, 4294901760
    %1521 = vmatpush1.msra.mxu0 %v1520
    %1522 = vmatprep.subr.mxu0 0.0
    %v1523 = vand.u32 %v771, 4294901760
    %1524 = vmatpush1.msra.mxu0 %v1523
    %1525 = vmatprep.subr.mxu0 0.0
    %1526 = vmatpush1.msra.mxu0 0.0
    %1527 = vmatprep.subr.mxu0 0.0
    %1528 = vmatpush1.msra.mxu0 0.0
    %1529 = vmatprep.subr.mxu0 0.0
    %1530 = vmatpush1.msra.mxu0 0.0
    %1531 = vmatprep.subr.mxu0 0.0
    %1532 = vmatpush1.msra.mxu0 0.0
    %1533 = vmatprep.subr.mxu0 0.0
    %1534 = vmatpush1.msra.mxu0 0.0
    %1535 = vmatprep.subr.mxu0 0.0
    %1536 = vmatpush1.msra.mxu0 0.0
    %1537 = vmatprep.subr.mxu0 0.0
    %1538 = vmatpush1.msra.mxu0 0.0
    %1539 = vmatprep.subr.mxu0 0.0
    %1540 = vmatpush1.msra.mxu0 0.0
    %1541 = vmatprep.subr.mxu0 0.0
    %1542 = vmatpush1.msra.mxu0 0.0
    %1543 = vmatprep.subr.mxu0 0.0
    %1544 = vmatpush1.msra.mxu0 0.0
    %1545 = vmatprep.subr.mxu0 0.0
    %1546 = vmatpush1.msra.mxu0 0.0
    %1547 = vmatprep.subr.mxu0 0.0
    %1548 = vmatpush1.msra.mxu0 0.0
    %1549 = vmatprep.subr.mxu0 0.0
    %1550 = vmatpush1.msra.mxu0 0.0
    %1551 = vmatprep.subr.mxu0 0.0
    %1552 = vmatpush1.msra.mxu0 0.0
    %1553 = vmatprep.subr.mxu0 0.0
    %1554 = vmatpush1.msra.mxu0 0.0
    %1555 = vmatprep.subr.mxu0 0.0
    %1556 = vmatpush1.msra.mxu0 0.0
    %1557 = vmatprep.subr.mxu0 0.0
    %1558 = vmatpush1.msra.mxu0 0.0
    %1559 = vmatprep.subr.mxu0 0.0
    %1560 = vmatpush1.msra.mxu0 0.0
    %1561 = vmatprep.subr.mxu0 0.0
    %1562 = vmatpush1.msra.mxu0 0.0
    %1563 = vmatprep.subr.mxu0 0.0
    %1564 = vmatpush1.msra.mxu0 0.0
    %1565 = vmatprep.subr.mxu0 0.0
    %1566 = vmatpush1.msra.mxu0 0.0
    %1567 = vmatprep.subr.mxu0 0.0
    %1568 = vmatpush1.msra.mxu0 0.0
    %1569 = vmatprep.subr.mxu0 0.0
    %1570 = vmatpush1.msra.mxu0 0.0
    %1571 = vmatprep.subr.mxu0 0.0
    %1572 = vmatpush1.msra.mxu0 0.0
    %1573 = vmatprep.subr.mxu0 0.0
    %1574 = vmatpush1.msra.mxu0 0.0
    %1575 = vmatprep.subr.mxu0 0.0
    %1576 = vmatpush1.msra.mxu0 0.0
    %1577 = vmatprep.subr.mxu0 0.0
    %1578 = vmatpush1.msra.mxu0 0.0
    %1579 = vmatprep.subr.mxu0 0.0
    %1580 = vmatpush1.msra.mxu0 0.0
    %1581 = vmatprep.mubr.f32.mxu0 0.0
    %v1582 = vand.u32 %v1261, 4294901760
    %v1583 = vsub.f32 %v1261, %v1582
    %v1584 = vand.u32 %v1583, 4294901760
    %1585 = vmatmul.mubr.f32.gmra.mrb[0].mxu0 %v1584
    %v1586 = vpop.f32.mrb[0].mxu0
    %v1587 = vadd.f32 %v1510, %v1586
    %v1588 = vpop.f32.mrb[0].mxu0
    %1589 = vdwg.mxu0
    %1590 = vmatprep.subr.mxu0 0.0
    %v1591 = vand.u32 %v768, 4294901760
    %v1592 = vsub.f32 %v768, %v1591
    %v1593 = vand.u32 %v1592, 4294901760
    %1594 = vmatpush1.msra.mxu0 %v1593
    %1595 = vmatprep.subr.mxu0 0.0
    %v1596 = vand.u32 %v769, 4294901760
    %v1597 = vsub.f32 %v769, %v1596
    %v1598 = vand.u32 %v1597, 4294901760
    %1599 = vmatpush1.msra.mxu0 %v1598
    %1600 = vmatprep.subr.mxu0 0.0
    %v1601 = vand.u32 %v770, 4294901760
    %v1602 = vsub.f32 %v770, %v1601
    %v1603 = vand.u32 %v1602, 4294901760
    %1604 = vmatpush1.msra.mxu0 %v1603
    %1605 = vmatprep.subr.mxu0 0.0
    %v1606 = vand.u32 %v771, 4294901760
    %v1607 = vsub.f32 %v771, %v1606
    %v1608 = vand.u32 %v1607, 4294901760
    %1609 = vmatpush1.msra.mxu0 %v1608
    %1610 = vmatprep.subr.mxu0 0.0
    %1611 = vmatpush1.msra.mxu0 0.0
    %1612 = vmatprep.subr.mxu0 0.0
    %1613 = vmatpush1.msra.mxu0 0.0
    %1614 = vmatprep.subr.mxu0 0.0
    %1615 = vmatpush1.msra.mxu0 0.0
    %1616 = vmatprep.subr.mxu0 0.0
    %1617 = vmatpush1.msra.mxu0 0.0
    %1618 = vmatprep.subr.mxu0 0.0
    %1619 = vmatpush1.msra.mxu0 0.0
    %1620 = vmatprep.subr.mxu0 0.0
    %1621 = vmatpush1.msra.mxu0 0.0
    %1622 = vmatprep.subr.mxu0 0.0
    %1623 = vmatpush1.msra.mxu0 0.0
    %1624 = vmatprep.subr.mxu0 0.0
    %1625 = vmatpush1.msra.mxu0 0.0
    %1626 = vmatprep.subr.mxu0 0.0
    %1627 = vmatpush1.msra.mxu0 0.0
    %1628 = vmatprep.subr.mxu0 0.0
    %1629 = vmatpush1.msra.mxu0 0.0
    %1630 = vmatprep.subr.mxu0 0.0
    %1631 = vmatpush1.msra.mxu0 0.0
    %1632 = vmatprep.subr.mxu0 0.0
    %1633 = vmatpush1.msra.mxu0 0.0
    %1634 = vmatprep.subr.mxu0 0.0
    %1635 = vmatpush1.msra.mxu0 0.0
    %1636 = vmatprep.subr.mxu0 0.0
    %1637 = vmatpush1.msra.mxu0 0.0
    %1638 = vmatprep.subr.mxu0 0.0
    %1639 = vmatpush1.msra.mxu0 0.0
    %1640 = vmatprep.subr.mxu0 0.0
    %1641 = vmatpush1.msra.mxu0 0.0
    %1642 = vmatprep.subr.mxu0 0.0
    %1643 = vmatpush1.msra.mxu0 0.0
    %1644 = vmatprep.subr.mxu0 0.0
    %1645 = vmatpush1.msra.mxu0 0.0
    %1646 = vmatprep.subr.mxu0 0.0
    %1647 = vmatpush1.msra.mxu0 0.0
    %1648 = vmatprep.subr.mxu0 0.0
    %1649 = vmatpush1.msra.mxu0 0.0
    %1650 = vmatprep.subr.mxu0 0.0
    %1651 = vmatpush1.msra.mxu0 0.0
    %1652 = vmatprep.subr.mxu0 0.0
    %1653 = vmatpush1.msra.mxu0 0.0
    %1654 = vmatprep.subr.mxu0 0.0
    %1655 = vmatpush1.msra.mxu0 0.0
    %1656 = vmatprep.subr.mxu0 0.0
    %1657 = vmatpush1.msra.mxu0 0.0
    %1658 = vmatprep.subr.mxu0 0.0
    %1659 = vmatpush1.msra.mxu0 0.0
    %1660 = vmatprep.subr.mxu0 0.0
    %1661 = vmatpush1.msra.mxu0 0.0
    %1662 = vmatprep.subr.mxu0 0.0
    %1663 = vmatpush1.msra.mxu0 0.0
    %1664 = vmatprep.subr.mxu0 0.0
    %1665 = vmatpush1.msra.mxu0 0.0
    %1666 = vmatprep.mubr.f32.mxu0 0.0
    %v1667 = vand.u32 %v1261, 4294901760
    %1668 = vmatmul.mubr.f32.gmra.mrb[0].mxu0 %v1667
    %v1669 = vpop.f32.mrb[0].mxu0
    %v1670 = vadd.f32 %v1587, %v1669
    %v1671 = vpop.f32.mrb[0].mxu0
    %1672 = vdwg.mxu0
    %1673 = vmatprep.subr.mxu0 0.0
    %v1674 = vand.u32 %v768, 4294901760
    %1675 = vmatpush1.msra.mxu0 %v1674
    %1676 = vmatprep.subr.mxu0 0.0
    %v1677 = vand.u32 %v769, 4294901760
    %1678 = vmatpush1.msra.mxu0 %v1677
    %1679 = vmatprep.subr.mxu0 0.0
    %v1680 = vand.u32 %v770, 4294901760
    %1681 = vmatpush1.msra.mxu0 %v1680
    %1682 = vmatprep.subr.mxu0 0.0
    %v1683 = vand.u32 %v771, 4294901760
    %1684 = vmatpush1.msra.mxu0 %v1683
    %1685 = vmatprep.subr.mxu0 0.0
    %1686 = vmatpush1.msra.mxu0 0.0
    %1687 = vmatprep.subr.mxu0 0.0
    %1688 = vmatpush1.msra.mxu0 0.0
    %1689 = vmatprep.subr.mxu0 0.0
    %1690 = vmatpush1.msra.mxu0 0.0
    %1691 = vmatprep.subr.mxu0 0.0
    %1692 = vmatpush1.msra.mxu0 0.0
    %1693 = vmatprep.subr.mxu0 0.0
    %1694 = vmatpush1.msra.mxu0 0.0
    %1695 = vmatprep.subr.mxu0 0.0
    %1696 = vmatpush1.msra.mxu0 0.0
    %1697 = vmatprep.subr.mxu0 0.0
    %1698 = vmatpush1.msra.mxu0 0.0
    %1699 = vmatprep.subr.mxu0 0.0
    %1700 = vmatpush1.msra.mxu0 0.0
    %1701 = vmatprep.subr.mxu0 0.0
    %1702 = vmatpush1.msra.mxu0 0.0
    %1703 = vmatprep.subr.mxu0 0.0
    %1704 = vmatpush1.msra.mxu0 0.0
    %1705 = vmatprep.subr.mxu0 0.0
    %1706 = vmatpush1.msra.mxu0 0.0
    %1707 = vmatprep.subr.mxu0 0.0
    %1708 = vmatpush1.msra.mxu0 0.0
    %1709 = vmatprep.subr.mxu0 0.0
    %1710 = vmatpush1.msra.mxu0 0.0
    %1711 = vmatprep.subr.mxu0 0.0
    %1712 = vmatpush1.msra.mxu0 0.0
    %1713 = vmatprep.subr.mxu0 0.0
    %1714 = vmatpush1.msra.mxu0 0.0
    %1715 = vmatprep.subr.mxu0 0.0
    %1716 = vmatpush1.msra.mxu0 0.0
    %1717 = vmatprep.subr.mxu0 0.0
    %1718 = vmatpush1.msra.mxu0 0.0
    %1719 = vmatprep.subr.mxu0 0.0
    %1720 = vmatpush1.msra.mxu0 0.0
    %1721 = vmatprep.subr.mxu0 0.0
    %1722 = vmatpush1.msra.mxu0 0.0
    %1723 = vmatprep.subr.mxu0 0.0
    %1724 = vmatpush1.msra.mxu0 0.0
    %1725 = vmatprep.subr.mxu0 0.0
    %1726 = vmatpush1.msra.mxu0 0.0
    %1727 = vmatprep.subr.mxu0 0.0
    %1728 = vmatpush1.msra.mxu0 0.0
    %1729 = vmatprep.subr.mxu0 0.0
    %1730 = vmatpush1.msra.mxu0 0.0
    %1731 = vmatprep.subr.mxu0 0.0
    %1732 = vmatpush1.msra.mxu0 0.0
    %1733 = vmatprep.subr.mxu0 0.0
    %1734 = vmatpush1.msra.mxu0 0.0
    %1735 = vmatprep.subr.mxu0 0.0
    %1736 = vmatpush1.msra.mxu0 0.0
    %1737 = vmatprep.subr.mxu0 0.0
    %1738 = vmatpush1.msra.mxu0 0.0
    %1739 = vmatprep.subr.mxu0 0.0
    %1740 = vmatpush1.msra.mxu0 0.0
    %1741 = vmatprep.mubr.f32.mxu0 0.0
    %v1742 = vand.u32 %v1261, 4294901760
    %1743 = vmatmul.mubr.f32.gmra.mrb[0].mxu0 %v1742
    %v1744 = vpop.f32.mrb[0].mxu0
    %v1745 = vadd.f32 %v1670, %v1744
    %v1746 = vpop.f32.mrb[0].mxu0
    %1747 = vdwg.mxu0
    %1748 = vst.msk [vmem:[#allocation10] sm:$0xff] %vm80, %v1257
    %1749 = vst.msk [vmem:[#allocation10 + $0x8] sm:$0xff] %vm80, %v1745
    // Predicated region
    $region34: #{tpu_custom_call.1} parent=1 // pred_check
      _
    $region35: #{tpu_custom_call.1} parent=1 // pred_check_branch
      %1751 = sbr.rel (0) target = $region37
    $region36: #{tpu_custom_call.1} parent=1 // pred_region
      %s1753 = ssub.s32 256, 256
      %1754 = vsyncadd [#allocation4], %s1753
      %s1755 = sshll.u32 [#allocation10], 4
      %s1756 = int_to_ptr.vmem [resolvable:$true] %s1755
      %1761 = dma.vmem_to_hbm [thread:$0]  %s1756, 256, %s4, [#allocation4], 128, 128, 8
    $region37: #{tpu_custom_call.1} parent=1 // pred_fallthru
      _
    // Predicated region
    $region38: #{tpu_custom_call.1} parent=1 // pred_check
      _
    $region39: #{tpu_custom_call.1} parent=1 // pred_check_branch
      %1763 = sbr.rel (0) target = $region41
    $region40: #{tpu_custom_call.1} parent=1 // pred_region
      %1764 = dma.done [#allocation4], 256
    $region41: #{tpu_custom_call.1} parent=1 // pred_fallthru
      _
    %1765 = vsyncpa [#allocation3], 1
    %1766 = vsyncpa [#allocation6], 1
    %1767 = vsyncpa [#allocation9], 1
    %1768 = vsyncpa [#allocation4], 1

</llo_original>
